<compile_context>
chip_gen: v6e
topology: v6e:2x2x1
jax: 0.10.0
libtpu: 0.0.40
codegen_flags: <defaults>
</compile_context>

<pallas_src>
import math

import jax
import jax.numpy as jnp
import numpy as np
from jax.experimental import pallas as pl
from jax.experimental.pallas import tpu as pltpu

LEAKY_SLOPE = 0.01     # nn.LeakyReLU default
RMS_EPS = 1e-4         # RunningMeanStd epsilon (mean=0, var=1 at init)
NUM_EXPERTS = 4
GATE_HSIZE = 64

# Raw parameter order (matches the torch module's registration order).
PARAM_NAMES = [
    "we0", "be0", "we2", "be2", "we4", "be4", "we6", "be6",
    "wmu", "bmu", "wlv", "blv",
    "wg0", "bg0", "wg1", "bg1", "wg2", "bg2",
    "wd0", "bd0", "wd1", "bd1", "wd2", "bd2", "wd3", "bd3", "wd4", "bd4",
]

# Names packed into the kernel's parameter slab (decoder biases are folded
# into the fused expert weight slabs, see _fuse_decoder_layer).
PACK_NAMES = [
    "we0", "be0", "we2", "be2", "we4", "be4", "we6", "be6",
    "wmu", "bmu", "wlv", "blv",
    "wg0", "bg0", "wg1", "bg1", "wg2", "bg2",
    "wd0", "wd1", "wd2", "wd3", "wd4",
]


def _leaky(t):
    return jnp.where(t >= 0, t, LEAKY_SLOPE * t)


# ------------------------------------------------------------------ shared math

def _forward_math(x2, w2, eps2, getp, dims, dot, recip, expand_coeff0,
                  reduce_experts):
    """Shared math for the Pallas kernel and the pure-JAX reference.

    x2: (N, In)  w2: (N, C)  eps2: (N, L); rows grouped per batch element
    (b*T .. b*T+T-1).  getp(name) -> 2-D param; decoder weights are fused
    (Din + E, E*block_w) slabs with bias rows folded in and outputs padded to
    block_w lanes.  expand_coeff0(coeff) -> (N, E*block_w) lane map whose lane
    j holds that row's batch element's t==0 coefficient of expert j//block_w.
    reduce_experts(y) -> (N, block_w) sum over the E lane blocks of y.
    """
    In, H, L, C, E, GH, T, block_w = dims

    # RunningMeanStd.normalize with mean=0, var=1: clip(x / sqrt(1+eps), -5, 5)
    inv = 1.0 / math.sqrt(1.0 + RMS_EPS)
    xn = jnp.clip(x2 * inv, -5.0, 5.0)
    # torch: w = normalize(w); w[w.isnan()] = 0
    wn = jnp.where(jnp.isnan(w2), 0.0, jnp.clip(w2 * inv, -5.0, 5.0))

    # --- encoder: ConditionalVAE.encode runs only the Linear modules (the
    # LeakyReLUs are skipped by the isinstance check) and re-prepends w before
    # every Linear after the first.
    h = dot(jnp.concatenate([xn, wn], axis=-1), getp("we0")) + getp("be0")
    h = dot(jnp.concatenate([wn, h], axis=-1), getp("we2")) + getp("be2")
    h = dot(jnp.concatenate([wn, h], axis=-1), getp("we4")) + getp("be4")
    enc = dot(jnp.concatenate([wn, h], axis=-1), getp("we6")) + getp("be6")

    # --- mu / log_var heads (LeakyReLU -> Linear), clamp, reparameterize.
    ea = _leaky(enc)
    mu = dot(ea, getp("wmu")) + getp("bmu")
    log_var = jnp.clip(dot(ea, getp("wlv")) + getp("blv"), -5.0, 5.0)
    z = mu + eps2 * jnp.exp(0.5 * log_var)

    # --- MixedDecoder gate: softmax(MLP(cat(z, c))).
    zc = jnp.concatenate([z, wn], axis=-1)                       # (N, L+C)
    g = _leaky(dot(zc, getp("wg0")) + getp("bg0"))
    g = _leaky(dot(g, getp("wg1")) + getp("bg1"))
    logits = dot(g, getp("wg2")) + getp("bg2")                   # (N, E)
    m = jnp.max(logits, axis=-1, keepdims=True)
    ex = jnp.exp(logits - m)
    coeff = ex * recip(jnp.sum(ex, axis=-1, keepdims=True))      # (N, E)

    # mixed_weight[:, 0]: every timestep of a batch element mixes the expert
    # weights with that element's t==0 gate coefficients.
    cmap = expand_coeff0(coeff)                                  # (N, E*block_w)

    # Per-timestep coefficients appended to every layer input; the fused expert
    # slabs carry the bias rows, so the coeff0-weighted block sum reproduces
    # mixed_bias = coeff @ B exactly (sum_e coeff0[e] == 1).
    zcc = jnp.concatenate([zc, coeff], axis=-1)                  # (N, L+C+E)
    layer_out = None
    specs = [("wd0", H, True), ("wd1", H, True), ("wd2", H, True),
             ("wd3", H, True), ("wd4", In, False)]
    for i, (wname, Dout, act) in enumerate(specs):
        inp = zcc if i == 0 else jnp.concatenate([zcc, layer_out], axis=-1)
        y_all = dot(inp, getp(wname))                            # (N, E*block_w)
        out = reduce_experts(y_all * cmap)[:, 0:Dout]
        layer_out = _leaky(out) if act else out

    return z, layer_out, mu, log_var


# ---------------------------------------------------------------- host packing

def _fuse_decoder_layer(w, b, zc_rows, block_w):
    """(E, Din, Dout) expert weights + (E, Dout) biases -> (Din + E, E*block_w).

    K-rows ordered [z,c | coeff | layer_out] to match the in-kernel input
    concat; each expert's outputs are lane-padded to block_w; the bias rows are
    tiled into every expert block (softmax coefficients sum to 1)."""
    w = jnp.asarray(w, jnp.float32)
    b = jnp.asarray(b, jnp.float32)
    E, Din, Dout = w.shape
    wp = jnp.pad(w, ((0, 0), (0, 0), (0, block_w - Dout)))
    fused = jnp.transpose(wp, (1, 0, 2)).reshape(Din, E * block_w)
    bias_rows = jnp.tile(jnp.pad(b, ((0, 0), (0, block_w - Dout))), (1, E))
    return jnp.concatenate([fused[:zc_rows], bias_rows, fused[zc_rows:]], axis=0)


def prepare_params(params, dims):
    """Raw 28-entry param list -> dict of 2-D f32 arrays keyed by PACK_NAMES."""
    In, H, L, C, E, GH, T, block_w = dims
    d = dict(zip(PARAM_NAMES, params))
    out = {}
    for k in PACK_NAMES:
        if k.startswith("wd"):
            out[k] = _fuse_decoder_layer(d[k], d["bd" + k[2:]], L + C, block_w)
        else:
            v = jnp.asarray(d[k], jnp.float32)
            out[k] = v.reshape(1, -1) if v.ndim == 1 else v
    return out


def pack_param_slab(pdict):
    """Stack all params into one (rows, 128k) f32 slab; every param starts on an
    8-row (sublane) boundary so every in-kernel static slice is aligned."""
    width = max(int(v.shape[1]) for v in pdict.values())
    width = ((width + 127) // 128) * 128
    layout, pieces, off = {}, [], 0
    for k in PACK_NAMES:
        v = pdict[k]
        r, c = int(v.shape[0]), int(v.shape[1])
        rp = ((r + 7) // 8) * 8
        layout[k] = (off, r, c)
        pieces.append(jnp.pad(v, ((0, rp - r), (0, width - c))))
        off += rp
    return jnp.concatenate(pieces, axis=0), layout


def _model_dims(params, x, w, eps):
    B, T, In = x.shape
    C = w.shape[-1]
    L = eps.shape[-1]
    H = params[0].shape[1]          # we0: (In+C, H)
    GH = params[12].shape[1]        # wg0: (L+C, GH)
    E = params[18].shape[0]         # wd0: (E, L+C, H)
    assert E >= 1 and (E & (E - 1)) == 0 and 128 % E == 0, \
        "expert count must be a power of two dividing 128"
    gran = 128 // E
    block_w = ((max(H, In) + gran - 1) // gran) * gran   # E*block_w % 128 == 0
    return (In, H, L, C, E, GH, T, block_w)


def _choose_block_batch(B, T, target_rows=1024):
    """Batch elements per grid block: whole batch elements, block rows % 8 == 0,
    ~target_rows rows/block, and >= 2 grid steps when B >= 2 (v7x has 2 TCs;
    the extra grid step costs ~0.35us on single-TC v5e/v6e)."""
    g = 1
    while (g * T) % 8:
        g += 1                                       # g <= 8, g*T is 8-aligned
    want = max(1, target_rows // T)
    if B >= 2:
        want = min(want, max(1, (B + 1) // 2))       # keep >= 2 grid steps
    bpb = max(g, (want // g) * g)
    bpb = min(bpb, ((B + g - 1) // g) * g)
    if B % bpb:                                      # prefer a nearby divisor of B
        for d in range(bpb, max(g - 1, bpb // 2 - 1), -1):
            if d % g == 0 and B % d == 0:
                return d
    return bpb


# -------------------------------------------------------------------- kernel

def _make_kernel(layout, dims, out_pad):
    In, H, L, C, E, GH, T, block_w = dims
    W = E * block_w

    def kernel(xwe_ref, p_ref, gmat_ref, bmat_ref, out_ref):
        def getp(name):
            off, r, c = layout[name]
            return p_ref[off:off + r, 0:c]       # static, sublane-aligned slice

        xwe = xwe_ref[...]
        x2 = xwe[:, 0:In]
        w2 = xwe[:, In:In + C]
        eps2 = xwe[:, In + C:In + C + L]

        # bf16 operands, f32 accumulation for all model matmuls.
        dot = lambda a, b: jnp.dot(a.astype(jnp.bfloat16), b.astype(jnp.bfloat16),
                                   preferred_element_type=jnp.float32)
        recip = lambda d: pl.reciprocal(d, approx=True)

        def expand_coeff0(coeff):
            # t==0 gather + broadcast over T via tiny block-local 0/1 matmuls
            # (host-precomputed constants, fetched once; no O(rows^2) in-kernel
            # compares).  Kept in exact f32 so the gate coefficients stay exact.
            t0 = jnp.dot(gmat_ref[...], coeff,
                         preferred_element_type=jnp.float32)        # (TBp, E)
            lane = jax.lax.broadcasted_iota(jnp.int32, (E, W), 1)
            expert = jax.lax.broadcasted_iota(jnp.int32, (E, W), 0)
            sel = ((lane >= expert * block_w) &
                   (lane < (expert + 1) * block_w)).astype(jnp.float32)
            t0w = jnp.dot(t0, sel, preferred_element_type=jnp.float32)  # (TBp, W)
            return jnp.dot(bmat_ref[...], t0w,
                           preferred_element_type=jnp.float32)          # (rows, W)

        def reduce_experts(yw):
            # Direction-insensitive halving roll tree over the E lane blocks.
            t, width = yw, W
            while width > block_w:
                width //= 2
                t = t + pltpu.roll(t, width, axis=1)
            return t[:, 0:block_w]

        z, dec, mu, lv = _forward_math(x2, w2, eps2, getp, dims, dot, recip,
                                       expand_coeff0, reduce_experts)

        packed = jnp.concatenate([z, dec, mu, lv], axis=-1)      # (rows, L+In+2L)
        pad = out_pad - packed.shape[-1]
        if pad:                                                  # lane-dense store
            packed = jnp.concatenate(
                [packed, jnp.zeros((packed.shape[0], pad), jnp.float32)], axis=-1)
        out_ref[...] = packed

    return kernel


# -------------------------------------------------------------------- wrapper

def conditional_vae_forward(params, x, w, eps, *, target_rows=1024):
    """x: (B, T, input_size)  w: (B, T, cond_size)  eps: (B, T, latent_size)."""
    dims = _model_dims(params, x, w, eps)
    In, H, L, C, E, GH, T, block_w = dims
    B = x.shape[0]
    N = B * T

    pdict = prepare_params(params, dims)
    slab, layout = pack_param_slab(pdict)

    bpb = _choose_block_batch(B, T, target_rows)
    Bp = ((B + bpb - 1) // bpb) * bpb                 # pad trailing block
    Np, rows_blk = Bp * T, bpb * T
    grid = (Bp // bpb,)

    din_in = In + C + L
    xwe = jnp.concatenate(
        [x.reshape(N, In), w.reshape(N, C), eps.reshape(N, L)],
        axis=-1).astype(jnp.float32)                  # one input slab
    if Np > N:
        xwe = jnp.concatenate([xwe, jnp.zeros((Np - N, din_in), jnp.float32)],
                              axis=0)

    # Block-local t==0 gather / broadcast-over-T 0/1 matrices (identical for
    # every block; constant index_map -> fetched once).  TB padded to 8 rows.
    TBp = ((bpb + 7) // 8) * 8
    gmat = np.zeros((TBp, rows_blk), np.float32)
    gmat[np.arange(bpb), np.arange(bpb) * T] = 1.0
    bmat = np.zeros((rows_blk, TBp), np.float32)
    bmat[np.arange(rows_blk), np.arange(rows_blk) // T] = 1.0
    gmat, bmat = jnp.asarray(gmat), jnp.asarray(bmat)

    out_w = L + In + L + L
    out_pad = ((out_w + 127) // 128) * 128            # lane-dense output slab

    kernel = _make_kernel(layout, dims, out_pad)
    fn = pl.pallas_call(
        kernel,
        grid=grid,
        in_specs=[
            pl.BlockSpec((rows_blk, din_in), lambda i: (i, 0)),
            # Grid-invariant slabs/constants (fetched once, stay resident).
            pl.BlockSpec(tuple(int(s) for s in slab.shape), lambda i: (0, 0)),
            pl.BlockSpec((TBp, rows_blk), lambda i: (0, 0)),
            pl.BlockSpec((rows_blk, TBp), lambda i: (0, 0)),
        ],
        out_specs=pl.BlockSpec((rows_blk, out_pad), lambda i: (i, 0)),
        out_shape=jax.ShapeDtypeStruct((Np, out_pad), jnp.float32),
        compiler_params=pltpu.CompilerParams(
            dimension_semantics=("parallel",),
            vmem_limit_bytes=32 * 1024 * 1024,
        ),
    )
    packed = fn(xwe, slab, gmat, bmat)

    z = packed[:N, 0:L].reshape(B, T, L)
    dec = packed[:N, L:L + In].reshape(B, T, In)
    mu = packed[:N, L + In:L + In + L].reshape(B, T, L)
    lv = packed[:N, L + In + L:out_w].reshape(B, T, L)
    return z, dec, mu, lv


# ------------------------------------------------------------ pure-JAX reference

def reference_forward(params, x, w, eps):
    dims = _model_dims(params, x, w, eps)
    In, H, L, C, E, GH, T, block_w = dims
    B = x.shape[0]
    N = B * T
    pdict = prepare_params(params, dims)

    dot = lambda a, b: jnp.dot(a.astype(jnp.bfloat16), b.astype(jnp.bfloat16),
                               preferred_element_type=jnp.float32)
    recip = lambda d: 1.0 / d

    def expand_coeff0(coeff):
        c0 = jnp.broadcast_to(coeff.reshape(B, T, E)[:, :1, :],
                              (B, T, E)).reshape(N, E)
        return jnp.repeat(c0, block_w, axis=1)

    def reduce_experts(yw):
        return yw.reshape(N, E, block_w).sum(axis=1)

    return _forward_math(
        x.reshape(N, In).astype(jnp.float32),
        w.reshape(N, C).astype(jnp.float32),
        eps.reshape(N, L).astype(jnp.float32),
        lambda k: pdict[k], dims, dot, recip, expand_coeff0, reduce_experts)


# --------------------------------------------------------------- synthetic init

def init_params(key, In, H, L, C, E=NUM_EXPERTS, GH=GATE_HSIZE):
    """Deterministic synthetic init mirroring the module's parameter shapes
    (Linear weights stored transposed as (in, out))."""
    keys = iter(jax.random.split(key, 32))

    def uni(shape, bound):
        return jax.random.uniform(next(keys), shape, jnp.float32, -bound, bound)

    def linear(din, dout):
        b = 1.0 / math.sqrt(din)
        return [uni((din, dout), b), uni((1, dout), b)]

    def expert_w(din, dout):               # kaiming-uniform-style, fan_in = din
        b = math.sqrt(6.0 / din)
        return uni((E, din, dout), b)

    params = []
    params += linear(In + C, H)            # encoder Linears
    params += linear(C + H, H)
    params += linear(C + H, H)
    params += linear(C + H, H)
    params += linear(H, L)                 # mu head
    params += linear(H, L)                 # log_var head
    params += linear(L + C, GH)            # gate MLP
    params += linear(GH, GH)
    params += linear(GH, E)
    inter = L + C + H                      # MixedDecoder experts (bias = 0.01)
    params += [expert_w(L + C, H), jnp.full((E, H), 0.01, jnp.float32)]
    for _ in range(3):
        params += [expert_w(inter, H), jnp.full((E, H), 0.01, jnp.float32)]
    params += [expert_w(inter, In), jnp.full((E, In), 0.01, jnp.float32)]
    return params


if __name__ == "__main__":
    In, H, L, C = 16, 32, 8, 8      # input_size, hidden_size, latent_size, cond_size
    B, T = 2, 8

    key = jax.random.PRNGKey(0)
    kp, kx, kw, ke = jax.random.split(key, 4)
    params = init_params(kp, In, H, L, C)
    x = jax.random.normal(kx, (B, T, In), jnp.float32)
    w = jax.random.normal(kw, (B, T, C), jnp.float32)
    # torch.randn_like reparameterization noise, generated host-side for determinism.
    eps = jax.random.normal(ke, (B, T, L), jnp.float32)

    z, dec, mu, lv = conditional_vae_forward(params, x, w, eps)
    jax.block_until_ready((z, dec, mu, lv))

    z_r, dec_r, mu_r, lv_r = reference_forward(params, x, w, eps)

    N = B * T
    np.testing.assert_allclose(np.asarray(z).reshape(N, -1), np.asarray(z_r),
                               rtol=2e-2, atol=2e-2)
    np.testing.assert_allclose(np.asarray(dec).reshape(N, -1), np.asarray(dec_r),
                               rtol=2e-2, atol=2e-2)
    np.testing.assert_allclose(np.asarray(mu).reshape(N, -1), np.asarray(mu_r),
                               rtol=2e-2, atol=2e-2)
    np.testing.assert_allclose(np.asarray(lv).reshape(N, -1), np.asarray(lv_r),
                               rtol=2e-2, atol=2e-2)

    print("KERNEL_OK")
</pallas_src>

<mosaic_0001>
module attributes {stable_mosaic.version = 11 : i64} {
  func.func @kernel(%arg0: i32, %arg1: memref<8x32xf32, #tpu.memory_space<vmem>>, %arg2: memref<672x128xf32, #tpu.memory_space<vmem>>, %arg3: memref<8x8xf32, #tpu.memory_space<vmem>>, %arg4: memref<8x8xf32, #tpu.memory_space<vmem>>, %arg5: memref<8x128xf32, #tpu.memory_space<vmem>>) attributes {dimension_semantics = [#tpu.dimension_semantics<parallel>], iteration_bounds = array<i64: 2>, scalar_prefetch = 0 : i64, scratch_operands = 0 : i64, tpu.core_type = #tpu.core_type<tc>, window_params = [{transform_indices = @transform_0, window_bounds = array<i64: 8, 32>}, {pipeline_mode = #tpu.pipeline_mode<synchronous>, transform_indices = @transform_1, window_bounds = array<i64: 672, 128>}, {pipeline_mode = #tpu.pipeline_mode<synchronous>, transform_indices = @transform_2, window_bounds = array<i64: 8, 8>}, {pipeline_mode = #tpu.pipeline_mode<synchronous>, transform_indices = @transform_3, window_bounds = array<i64: 8, 8>}, {transform_indices = @transform_4, window_bounds = array<i64: 8, 128>}]} {
    %c0 = arith.constant 0 : index
    %c0_0 = arith.constant 0 : index
    %0 = vector.load %arg1[%c0, %c0_0] : memref<8x32xf32, #tpu.memory_space<vmem>>, vector<8x32xf32>
    %1 = vector.extract_strided_slice %0 {offsets = [0, 0], sizes = [8, 16], strides = [1, 1]} : vector<8x32xf32> to vector<8x16xf32>
    %2 = vector.extract_strided_slice %0 {offsets = [0, 16], sizes = [8, 8], strides = [1, 1]} : vector<8x32xf32> to vector<8x8xf32>
    %3 = vector.extract_strided_slice %0 {offsets = [0, 24], sizes = [8, 8], strides = [1, 1]} : vector<8x32xf32> to vector<8x8xf32>
    %cst = arith.constant 0.999949991 : f32
    %4 = vector.broadcast %cst : f32 to vector<8x16xf32>
    %5 = arith.mulf %1, %4 : vector<8x16xf32>
    %cst_1 = arith.constant -5.000000e+00 : f32
    %cst_2 = arith.constant 5.000000e+00 : f32
    %6 = vector.broadcast %cst_1 : f32 to vector<8x16xf32>
    %7 = arith.maximumf %6, %5 : vector<8x16xf32>
    %8 = vector.broadcast %cst_2 : f32 to vector<8x16xf32>
    %9 = arith.minimumf %8, %7 : vector<8x16xf32>
    %10 = arith.cmpf one, %2, %2 : vector<8x8xf32>
    %cst_3 = arith.constant 0.999949991 : f32
    %11 = vector.broadcast %cst_3 : f32 to vector<8x8xf32>
    %12 = arith.mulf %2, %11 : vector<8x8xf32>
    %cst_4 = arith.constant -5.000000e+00 : f32
    %cst_5 = arith.constant 5.000000e+00 : f32
    %13 = vector.broadcast %cst_4 : f32 to vector<8x8xf32>
    %14 = arith.maximumf %13, %12 : vector<8x8xf32>
    %15 = vector.broadcast %cst_5 : f32 to vector<8x8xf32>
    %16 = arith.minimumf %15, %14 : vector<8x8xf32>
    %cst_6 = arith.constant 0.000000e+00 : f32
    %17 = vector.broadcast %cst_6 : f32 to vector<8x8xf32>
    %18 = arith.select %10, %17, %16 : vector<8x8xi1>, vector<8x8xf32>
    %19 = tpu.concatenate %9, %18 in 1 : vector<8x16xf32>, vector<8x8xf32> -> vector<8x24xf32>
    %c0_7 = arith.constant 0 : index
    %c0_8 = arith.constant 0 : index
    %20 = vector.load %arg2[%c0_7, %c0_8] : memref<672x128xf32, #tpu.memory_space<vmem>>, vector<24x32xf32>
    %21 = arith.truncf %19 : vector<8x24xf32> to vector<8x24xbf16>
    %22 = arith.truncf %20 : vector<24x32xf32> to vector<24x32xbf16>
    %cst_9 = arith.constant dense<0.000000e+00> : vector<8x32xf32>
    %23 = tpu.matmul %21, %22, %cst_9 {dimension_numbers = #tpu.dot_dimension_numbers<[1], [0], [0], [1], [0, 0, 1, 1], [], []>} : vector<8x24xbf16>, vector<24x32xbf16>, vector<8x32xf32> -> vector<8x32xf32>
    %c24 = arith.constant 24 : index
    %c0_10 = arith.constant 0 : index
    %24 = vector.load %arg2[%c24, %c0_10] : memref<672x128xf32, #tpu.memory_space<vmem>>, vector<1x32xf32>
    %25 = vector.broadcast %24 : vector<1x32xf32> to vector<8x32xf32>
    %26 = arith.addf %23, %25 : vector<8x32xf32>
    %27 = tpu.concatenate %18, %26 in 1 : vector<8x8xf32>, vector<8x32xf32> -> vector<8x40xf32>
    %c32 = arith.constant 32 : index
    %c0_11 = arith.constant 0 : index
    %28 = vector.load %arg2[%c32, %c0_11] : memref<672x128xf32, #tpu.memory_space<vmem>>, vector<40x32xf32>
    %29 = arith.truncf %27 : vector<8x40xf32> to vector<8x40xbf16>
    %30 = arith.truncf %28 : vector<40x32xf32> to vector<40x32xbf16>
    %cst_12 = arith.constant dense<0.000000e+00> : vector<8x32xf32>
    %31 = tpu.matmul %29, %30, %cst_12 {dimension_numbers = #tpu.dot_dimension_numbers<[1], [0], [0], [1], [0, 0, 1, 1], [], []>} : vector<8x40xbf16>, vector<40x32xbf16>, vector<8x32xf32> -> vector<8x32xf32>
    %c72 = arith.constant 72 : index
    %c0_13 = arith.constant 0 : index
    %32 = vector.load %arg2[%c72, %c0_13] : memref<672x128xf32, #tpu.memory_space<vmem>>, vector<1x32xf32>
    %33 = vector.broadcast %32 : vector<1x32xf32> to vector<8x32xf32>
    %34 = arith.addf %31, %33 : vector<8x32xf32>
    %35 = tpu.concatenate %18, %34 in 1 : vector<8x8xf32>, vector<8x32xf32> -> vector<8x40xf32>
    %c80 = arith.constant 80 : index
    %c0_14 = arith.constant 0 : index
    %36 = vector.load %arg2[%c80, %c0_14] : memref<672x128xf32, #tpu.memory_space<vmem>>, vector<40x32xf32>
    %37 = arith.truncf %35 : vector<8x40xf32> to vector<8x40xbf16>
    %38 = arith.truncf %36 : vector<40x32xf32> to vector<40x32xbf16>
    %cst_15 = arith.constant dense<0.000000e+00> : vector<8x32xf32>
    %39 = tpu.matmul %37, %38, %cst_15 {dimension_numbers = #tpu.dot_dimension_numbers<[1], [0], [0], [1], [0, 0, 1, 1], [], []>} : vector<8x40xbf16>, vector<40x32xbf16>, vector<8x32xf32> -> vector<8x32xf32>
    %c120 = arith.constant 120 : index
    %c0_16 = arith.constant 0 : index
    %40 = vector.load %arg2[%c120, %c0_16] : memref<672x128xf32, #tpu.memory_space<vmem>>, vector<1x32xf32>
    %41 = vector.broadcast %40 : vector<1x32xf32> to vector<8x32xf32>
    %42 = arith.addf %39, %41 : vector<8x32xf32>
    %43 = tpu.concatenate %18, %42 in 1 : vector<8x8xf32>, vector<8x32xf32> -> vector<8x40xf32>
    %c128 = arith.constant 128 : index
    %c0_17 = arith.constant 0 : index
    %44 = vector.load %arg2[%c128, %c0_17] : memref<672x128xf32, #tpu.memory_space<vmem>>, vector<40x32xf32>
    %45 = arith.truncf %43 : vector<8x40xf32> to vector<8x40xbf16>
    %46 = arith.truncf %44 : vector<40x32xf32> to vector<40x32xbf16>
    %cst_18 = arith.constant dense<0.000000e+00> : vector<8x32xf32>
    %47 = tpu.matmul %45, %46, %cst_18 {dimension_numbers = #tpu.dot_dimension_numbers<[1], [0], [0], [1], [0, 0, 1, 1], [], []>} : vector<8x40xbf16>, vector<40x32xbf16>, vector<8x32xf32> -> vector<8x32xf32>
    %c168 = arith.constant 168 : index
    %c0_19 = arith.constant 0 : index
    %48 = vector.load %arg2[%c168, %c0_19] : memref<672x128xf32, #tpu.memory_space<vmem>>, vector<1x32xf32>
    %49 = vector.broadcast %48 : vector<1x32xf32> to vector<8x32xf32>
    %50 = arith.addf %47, %49 : vector<8x32xf32>
    %cst_20 = arith.constant 0.000000e+00 : f32
    %51 = vector.broadcast %cst_20 : f32 to vector<8x32xf32>
    %52 = arith.cmpf oge, %50, %51 : vector<8x32xf32>
    %cst_21 = arith.constant 0.00999999977 : f32
    %53 = vector.broadcast %cst_21 : f32 to vector<8x32xf32>
    %54 = arith.mulf %53, %50 : vector<8x32xf32>
    %55 = arith.select %52, %50, %54 : vector<8x32xi1>, vector<8x32xf32>
    %c176 = arith.constant 176 : index
    %c0_22 = arith.constant 0 : index
    %56 = vector.load %arg2[%c176, %c0_22] : memref<672x128xf32, #tpu.memory_space<vmem>>, vector<32x8xf32>
    %57 = arith.truncf %55 : vector<8x32xf32> to vector<8x32xbf16>
    %58 = arith.truncf %56 : vector<32x8xf32> to vector<32x8xbf16>
    %cst_23 = arith.constant dense<0.000000e+00> : vector<8x8xf32>
    %59 = tpu.matmul %57, %58, %cst_23 {dimension_numbers = #tpu.dot_dimension_numbers<[1], [0], [0], [1], [0, 0, 1, 1], [], []>} : vector<8x32xbf16>, vector<32x8xbf16>, vector<8x8xf32> -> vector<8x8xf32>
    %c208 = arith.constant 208 : index
    %c0_24 = arith.constant 0 : index
    %60 = vector.load %arg2[%c208, %c0_24] : memref<672x128xf32, #tpu.memory_space<vmem>>, vector<1x8xf32>
    %61 = vector.broadcast %60 : vector<1x8xf32> to vector<8x8xf32>
    %62 = arith.addf %59, %61 : vector<8x8xf32>
    %c216 = arith.constant 216 : index
    %c0_25 = arith.constant 0 : index
    %63 = vector.load %arg2[%c216, %c0_25] : memref<672x128xf32, #tpu.memory_space<vmem>>, vector<32x8xf32>
    %64 = arith.truncf %55 : vector<8x32xf32> to vector<8x32xbf16>
    %65 = arith.truncf %63 : vector<32x8xf32> to vector<32x8xbf16>
    %cst_26 = arith.constant dense<0.000000e+00> : vector<8x8xf32>
    %66 = tpu.matmul %64, %65, %cst_26 {dimension_numbers = #tpu.dot_dimension_numbers<[1], [0], [0], [1], [0, 0, 1, 1], [], []>} : vector<8x32xbf16>, vector<32x8xbf16>, vector<8x8xf32> -> vector<8x8xf32>
    %c248 = arith.constant 248 : index
    %c0_27 = arith.constant 0 : index
    %67 = vector.load %arg2[%c248, %c0_27] : memref<672x128xf32, #tpu.memory_space<vmem>>, vector<1x8xf32>
    %68 = vector.broadcast %67 : vector<1x8xf32> to vector<8x8xf32>
    %69 = arith.addf %66, %68 : vector<8x8xf32>
    %cst_28 = arith.constant -5.000000e+00 : f32
    %cst_29 = arith.constant 5.000000e+00 : f32
    %70 = vector.broadcast %cst_28 : f32 to vector<8x8xf32>
    %71 = arith.maximumf %70, %69 : vector<8x8xf32>
    %72 = vector.broadcast %cst_29 : f32 to vector<8x8xf32>
    %73 = arith.minimumf %72, %71 : vector<8x8xf32>
    %cst_30 = arith.constant 5.000000e-01 : f32
    %74 = vector.broadcast %cst_30 : f32 to vector<8x8xf32>
    %75 = arith.mulf %74, %73 : vector<8x8xf32>
    %76 = math.exp %75 : vector<8x8xf32>
    %77 = arith.mulf %3, %76 : vector<8x8xf32>
    %78 = arith.addf %62, %77 : vector<8x8xf32>
    %79 = tpu.concatenate %78, %18 in 1 : vector<8x8xf32>, vector<8x8xf32> -> vector<8x16xf32>
    %c256 = arith.constant 256 : index
    %c0_31 = arith.constant 0 : index
    %80 = vector.load %arg2[%c256, %c0_31] : memref<672x128xf32, #tpu.memory_space<vmem>>, vector<16x64xf32>
    %81 = arith.truncf %79 : vector<8x16xf32> to vector<8x16xbf16>
    %82 = arith.truncf %80 : vector<16x64xf32> to vector<16x64xbf16>
    %cst_32 = arith.constant dense<0.000000e+00> : vector<8x64xf32>
    %83 = tpu.matmul %81, %82, %cst_32 {dimension_numbers = #tpu.dot_dimension_numbers<[1], [0], [0], [1], [0, 0, 1, 1], [], []>} : vector<8x16xbf16>, vector<16x64xbf16>, vector<8x64xf32> -> vector<8x64xf32>
    %c272 = arith.constant 272 : index
    %c0_33 = arith.constant 0 : index
    %84 = vector.load %arg2[%c272, %c0_33] : memref<672x128xf32, #tpu.memory_space<vmem>>, vector<1x64xf32>
    %85 = vector.broadcast %84 : vector<1x64xf32> to vector<8x64xf32>
    %86 = arith.addf %83, %85 : vector<8x64xf32>
    %cst_34 = arith.constant 0.000000e+00 : f32
    %87 = vector.broadcast %cst_34 : f32 to vector<8x64xf32>
    %88 = arith.cmpf oge, %86, %87 : vector<8x64xf32>
    %cst_35 = arith.constant 0.00999999977 : f32
    %89 = vector.broadcast %cst_35 : f32 to vector<8x64xf32>
    %90 = arith.mulf %89, %86 : vector<8x64xf32>
    %91 = arith.select %88, %86, %90 : vector<8x64xi1>, vector<8x64xf32>
    %c280 = arith.constant 280 : index
    %c0_36 = arith.constant 0 : index
    %92 = vector.load %arg2[%c280, %c0_36] : memref<672x128xf32, #tpu.memory_space<vmem>>, vector<64x64xf32>
    %93 = arith.truncf %91 : vector<8x64xf32> to vector<8x64xbf16>
    %94 = arith.truncf %92 : vector<64x64xf32> to vector<64x64xbf16>
    %cst_37 = arith.constant dense<0.000000e+00> : vector<8x64xf32>
    %95 = tpu.matmul %93, %94, %cst_37 {dimension_numbers = #tpu.dot_dimension_numbers<[1], [0], [0], [1], [0, 0, 1, 1], [], []>} : vector<8x64xbf16>, vector<64x64xbf16>, vector<8x64xf32> -> vector<8x64xf32>
    %c344 = arith.constant 344 : index
    %c0_38 = arith.constant 0 : index
    %96 = vector.load %arg2[%c344, %c0_38] : memref<672x128xf32, #tpu.memory_space<vmem>>, vector<1x64xf32>
    %97 = vector.broadcast %96 : vector<1x64xf32> to vector<8x64xf32>
    %98 = arith.addf %95, %97 : vector<8x64xf32>
    %cst_39 = arith.constant 0.000000e+00 : f32
    %99 = vector.broadcast %cst_39 : f32 to vector<8x64xf32>
    %100 = arith.cmpf oge, %98, %99 : vector<8x64xf32>
    %cst_40 = arith.constant 0.00999999977 : f32
    %101 = vector.broadcast %cst_40 : f32 to vector<8x64xf32>
    %102 = arith.mulf %101, %98 : vector<8x64xf32>
    %103 = arith.select %100, %98, %102 : vector<8x64xi1>, vector<8x64xf32>
    %c352 = arith.constant 352 : index
    %c0_41 = arith.constant 0 : index
    %104 = vector.load %arg2[%c352, %c0_41] : memref<672x128xf32, #tpu.memory_space<vmem>>, vector<64x4xf32>
    %105 = arith.truncf %103 : vector<8x64xf32> to vector<8x64xbf16>
    %106 = arith.truncf %104 : vector<64x4xf32> to vector<64x4xbf16>
    %cst_42 = arith.constant dense<0.000000e+00> : vector<8x4xf32>
    %107 = tpu.matmul %105, %106, %cst_42 {dimension_numbers = #tpu.dot_dimension_numbers<[1], [0], [0], [1], [0, 0, 1, 1], [], []>} : vector<8x64xbf16>, vector<64x4xbf16>, vector<8x4xf32> -> vector<8x4xf32>
    %c416 = arith.constant 416 : index
    %c0_43 = arith.constant 0 : index
    %108 = vector.load %arg2[%c416, %c0_43] : memref<672x128xf32, #tpu.memory_space<vmem>>, vector<1x4xf32>
    %109 = vector.broadcast %108 : vector<1x4xf32> to vector<8x4xf32>
    %110 = arith.addf %107, %109 : vector<8x4xf32>
    %cst_44 = arith.constant dense<0xFF800000> : vector<8xf32>
    %111 = vector.multi_reduction <maximumf>, %110, %cst_44 [1] : vector<8x4xf32> to vector<8xf32>
    %112 = vector.shape_cast %111 : vector<8xf32> to vector<8x1xf32>
    %113 = vector.broadcast %112 : vector<8x1xf32> to vector<8x4xf32>
    %114 = arith.subf %110, %113 : vector<8x4xf32>
    %115 = math.exp %114 : vector<8x4xf32>
    %cst_45 = arith.constant dense<0.000000e+00> : vector<8xf32>
    %116 = vector.multi_reduction <add>, %115, %cst_45 [1] : vector<8x4xf32> to vector<8xf32>
    %117 = vector.shape_cast %116 : vector<8xf32> to vector<8x1xf32>
    %118 = tpu.reciprocal %117 {approx = true} : vector<8x1xf32> -> vector<8x1xf32>
    %119 = vector.broadcast %118 : vector<8x1xf32> to vector<8x4xf32>
    %120 = arith.mulf %115, %119 : vector<8x4xf32>
    %c0_46 = arith.constant 0 : index
    %c0_47 = arith.constant 0 : index
    %121 = vector.load %arg3[%c0_46, %c0_47] : memref<8x8xf32, #tpu.memory_space<vmem>>, vector<8x8xf32>
    %cst_48 = arith.constant dense<0.000000e+00> : vector<8x4xf32>
    %122 = tpu.matmul %121, %120, %cst_48 {dimension_numbers = #tpu.dot_dimension_numbers<[1], [0], [0], [1], [0, 0, 1, 1], [], []>} : vector<8x8xf32>, vector<8x4xf32>, vector<8x4xf32> -> vector<8x4xf32>
    %123 = tpu.iota {dimensions = array<i32: 1>} : vector<4x128xi32>
    %124 = tpu.iota {dimensions = array<i32: 0>} : vector<4x128xi32>
    %c32_i32 = arith.constant 32 : i32
    %125 = vector.broadcast %c32_i32 : i32 to vector<4x128xi32>
    %126 = arith.muli %124, %125 : vector<4x128xi32>
    %127 = arith.cmpi sge, %123, %126 : vector<4x128xi32>
    %c1_i32 = arith.constant 1 : i32
    %128 = vector.broadcast %c1_i32 : i32 to vector<4x128xi32>
    %129 = arith.addi %124, %128 : vector<4x128xi32>
    %c32_i32_49 = arith.constant 32 : i32
    %130 = vector.broadcast %c32_i32_49 : i32 to vector<4x128xi32>
    %131 = arith.muli %129, %130 : vector<4x128xi32>
    %132 = arith.cmpi slt, %123, %131 : vector<4x128xi32>
    %133 = arith.andi %127, %132 : vector<4x128xi1>
    %134 = arith.extui %133 : vector<4x128xi1> to vector<4x128xi32>
    %135 = arith.sitofp %134 : vector<4x128xi32> to vector<4x128xf32>
    %cst_50 = arith.constant dense<0.000000e+00> : vector<8x128xf32>
    %136 = tpu.matmul %122, %135, %cst_50 {dimension_numbers = #tpu.dot_dimension_numbers<[1], [0], [0], [1], [0, 0, 1, 1], [], []>} : vector<8x4xf32>, vector<4x128xf32>, vector<8x128xf32> -> vector<8x128xf32>
    %c0_51 = arith.constant 0 : index
    %c0_52 = arith.constant 0 : index
    %137 = vector.load %arg4[%c0_51, %c0_52] : memref<8x8xf32, #tpu.memory_space<vmem>>, vector<8x8xf32>
    %cst_53 = arith.constant dense<0.000000e+00> : vector<8x128xf32>
    %138 = tpu.matmul %137, %136, %cst_53 {dimension_numbers = #tpu.dot_dimension_numbers<[1], [0], [0], [1], [0, 0, 1, 1], [], []>} : vector<8x8xf32>, vector<8x128xf32>, vector<8x128xf32> -> vector<8x128xf32>
    %139 = tpu.concatenate %79, %120 in 1 : vector<8x16xf32>, vector<8x4xf32> -> vector<8x20xf32>
    %c424 = arith.constant 424 : index
    %c0_54 = arith.constant 0 : index
    %140 = vector.load %arg2[%c424, %c0_54] : memref<672x128xf32, #tpu.memory_space<vmem>>, vector<20x128xf32>
    %141 = arith.truncf %139 : vector<8x20xf32> to vector<8x20xbf16>
    %142 = arith.truncf %140 : vector<20x128xf32> to vector<20x128xbf16>
    %cst_55 = arith.constant dense<0.000000e+00> : vector<8x128xf32>
    %143 = tpu.matmul %141, %142, %cst_55 {dimension_numbers = #tpu.dot_dimension_numbers<[1], [0], [0], [1], [0, 0, 1, 1], [], []>} : vector<8x20xbf16>, vector<20x128xbf16>, vector<8x128xf32> -> vector<8x128xf32>
    %144 = arith.mulf %143, %138 : vector<8x128xf32>
    %c64_i32 = arith.constant 64 : i32
    %145 = tpu.dynamic_rotate %144 by %c64_i32 dim 1 : vector<8x128xf32>, i32 -> vector<8x128xf32>
    %146 = arith.addf %144, %145 : vector<8x128xf32>
    %c32_i32_56 = arith.constant 32 : i32
    %147 = tpu.dynamic_rotate %146 by %c32_i32_56 dim 1 : vector<8x128xf32>, i32 -> vector<8x128xf32>
    %148 = arith.addf %146, %147 : vector<8x128xf32>
    %149 = vector.extract_strided_slice %148 {offsets = [0, 0], sizes = [8, 32], strides = [1, 1]} : vector<8x128xf32> to vector<8x32xf32>
    %cst_57 = arith.constant 0.000000e+00 : f32
    %150 = vector.broadcast %cst_57 : f32 to vector<8x32xf32>
    %151 = arith.cmpf oge, %149, %150 : vector<8x32xf32>
    %cst_58 = arith.constant 0.00999999977 : f32
    %152 = vector.broadcast %cst_58 : f32 to vector<8x32xf32>
    %153 = arith.mulf %152, %149 : vector<8x32xf32>
    %154 = arith.select %151, %149, %153 : vector<8x32xi1>, vector<8x32xf32>
    %155 = tpu.concatenate %139, %154 in 1 : vector<8x20xf32>, vector<8x32xf32> -> vector<8x52xf32>
    %c448 = arith.constant 448 : index
    %c0_59 = arith.constant 0 : index
    %156 = vector.load %arg2[%c448, %c0_59] : memref<672x128xf32, #tpu.memory_space<vmem>>, vector<52x128xf32>
    %157 = arith.truncf %155 : vector<8x52xf32> to vector<8x52xbf16>
    %158 = arith.truncf %156 : vector<52x128xf32> to vector<52x128xbf16>
    %cst_60 = arith.constant dense<0.000000e+00> : vector<8x128xf32>
    %159 = tpu.matmul %157, %158, %cst_60 {dimension_numbers = #tpu.dot_dimension_numbers<[1], [0], [0], [1], [0, 0, 1, 1], [], []>} : vector<8x52xbf16>, vector<52x128xbf16>, vector<8x128xf32> -> vector<8x128xf32>
    %160 = arith.mulf %159, %138 : vector<8x128xf32>
    %c64_i32_61 = arith.constant 64 : i32
    %161 = tpu.dynamic_rotate %160 by %c64_i32_61 dim 1 : vector<8x128xf32>, i32 -> vector<8x128xf32>
    %162 = arith.addf %160, %161 : vector<8x128xf32>
    %c32_i32_62 = arith.constant 32 : i32
    %163 = tpu.dynamic_rotate %162 by %c32_i32_62 dim 1 : vector<8x128xf32>, i32 -> vector<8x128xf32>
    %164 = arith.addf %162, %163 : vector<8x128xf32>
    %165 = vector.extract_strided_slice %164 {offsets = [0, 0], sizes = [8, 32], strides = [1, 1]} : vector<8x128xf32> to vector<8x32xf32>
    %cst_63 = arith.constant 0.000000e+00 : f32
    %166 = vector.broadcast %cst_63 : f32 to vector<8x32xf32>
    %167 = arith.cmpf oge, %165, %166 : vector<8x32xf32>
    %cst_64 = arith.constant 0.00999999977 : f32
    %168 = vector.broadcast %cst_64 : f32 to vector<8x32xf32>
    %169 = arith.mulf %168, %165 : vector<8x32xf32>
    %170 = arith.select %167, %165, %169 : vector<8x32xi1>, vector<8x32xf32>
    %171 = tpu.concatenate %139, %170 in 1 : vector<8x20xf32>, vector<8x32xf32> -> vector<8x52xf32>
    %c504 = arith.constant 504 : index
    %c0_65 = arith.constant 0 : index
    %172 = vector.load %arg2[%c504, %c0_65] : memref<672x128xf32, #tpu.memory_space<vmem>>, vector<52x128xf32>
    %173 = arith.truncf %171 : vector<8x52xf32> to vector<8x52xbf16>
    %174 = arith.truncf %172 : vector<52x128xf32> to vector<52x128xbf16>
    %cst_66 = arith.constant dense<0.000000e+00> : vector<8x128xf32>
    %175 = tpu.matmul %173, %174, %cst_66 {dimension_numbers = #tpu.dot_dimension_numbers<[1], [0], [0], [1], [0, 0, 1, 1], [], []>} : vector<8x52xbf16>, vector<52x128xbf16>, vector<8x128xf32> -> vector<8x128xf32>
    %176 = arith.mulf %175, %138 : vector<8x128xf32>
    %c64_i32_67 = arith.constant 64 : i32
    %177 = tpu.dynamic_rotate %176 by %c64_i32_67 dim 1 : vector<8x128xf32>, i32 -> vector<8x128xf32>
    %178 = arith.addf %176, %177 : vector<8x128xf32>
    %c32_i32_68 = arith.constant 32 : i32
    %179 = tpu.dynamic_rotate %178 by %c32_i32_68 dim 1 : vector<8x128xf32>, i32 -> vector<8x128xf32>
    %180 = arith.addf %178, %179 : vector<8x128xf32>
    %181 = vector.extract_strided_slice %180 {offsets = [0, 0], sizes = [8, 32], strides = [1, 1]} : vector<8x128xf32> to vector<8x32xf32>
    %cst_69 = arith.constant 0.000000e+00 : f32
    %182 = vector.broadcast %cst_69 : f32 to vector<8x32xf32>
    %183 = arith.cmpf oge, %181, %182 : vector<8x32xf32>
    %cst_70 = arith.constant 0.00999999977 : f32
    %184 = vector.broadcast %cst_70 : f32 to vector<8x32xf32>
    %185 = arith.mulf %184, %181 : vector<8x32xf32>
    %186 = arith.select %183, %181, %185 : vector<8x32xi1>, vector<8x32xf32>
    %187 = tpu.concatenate %139, %186 in 1 : vector<8x20xf32>, vector<8x32xf32> -> vector<8x52xf32>
    %c560 = arith.constant 560 : index
    %c0_71 = arith.constant 0 : index
    %188 = vector.load %arg2[%c560, %c0_71] : memref<672x128xf32, #tpu.memory_space<vmem>>, vector<52x128xf32>
    %189 = arith.truncf %187 : vector<8x52xf32> to vector<8x52xbf16>
    %190 = arith.truncf %188 : vector<52x128xf32> to vector<52x128xbf16>
    %cst_72 = arith.constant dense<0.000000e+00> : vector<8x128xf32>
    %191 = tpu.matmul %189, %190, %cst_72 {dimension_numbers = #tpu.dot_dimension_numbers<[1], [0], [0], [1], [0, 0, 1, 1], [], []>} : vector<8x52xbf16>, vector<52x128xbf16>, vector<8x128xf32> -> vector<8x128xf32>
    %192 = arith.mulf %191, %138 : vector<8x128xf32>
    %c64_i32_73 = arith.constant 64 : i32
    %193 = tpu.dynamic_rotate %192 by %c64_i32_73 dim 1 : vector<8x128xf32>, i32 -> vector<8x128xf32>
    %194 = arith.addf %192, %193 : vector<8x128xf32>
    %c32_i32_74 = arith.constant 32 : i32
    %195 = tpu.dynamic_rotate %194 by %c32_i32_74 dim 1 : vector<8x128xf32>, i32 -> vector<8x128xf32>
    %196 = arith.addf %194, %195 : vector<8x128xf32>
    %197 = vector.extract_strided_slice %196 {offsets = [0, 0], sizes = [8, 32], strides = [1, 1]} : vector<8x128xf32> to vector<8x32xf32>
    %cst_75 = arith.constant 0.000000e+00 : f32
    %198 = vector.broadcast %cst_75 : f32 to vector<8x32xf32>
    %199 = arith.cmpf oge, %197, %198 : vector<8x32xf32>
    %cst_76 = arith.constant 0.00999999977 : f32
    %200 = vector.broadcast %cst_76 : f32 to vector<8x32xf32>
    %201 = arith.mulf %200, %197 : vector<8x32xf32>
    %202 = arith.select %199, %197, %201 : vector<8x32xi1>, vector<8x32xf32>
    %203 = tpu.concatenate %139, %202 in 1 : vector<8x20xf32>, vector<8x32xf32> -> vector<8x52xf32>
    %c616 = arith.constant 616 : index
    %c0_77 = arith.constant 0 : index
    %204 = vector.load %arg2[%c616, %c0_77] : memref<672x128xf32, #tpu.memory_space<vmem>>, vector<52x128xf32>
    %205 = arith.truncf %203 : vector<8x52xf32> to vector<8x52xbf16>
    %206 = arith.truncf %204 : vector<52x128xf32> to vector<52x128xbf16>
    %cst_78 = arith.constant dense<0.000000e+00> : vector<8x128xf32>
    %207 = tpu.matmul %205, %206, %cst_78 {dimension_numbers = #tpu.dot_dimension_numbers<[1], [0], [0], [1], [0, 0, 1, 1], [], []>} : vector<8x52xbf16>, vector<52x128xbf16>, vector<8x128xf32> -> vector<8x128xf32>
    %208 = arith.mulf %207, %138 : vector<8x128xf32>
    %c64_i32_79 = arith.constant 64 : i32
    %209 = tpu.dynamic_rotate %208 by %c64_i32_79 dim 1 : vector<8x128xf32>, i32 -> vector<8x128xf32>
    %210 = arith.addf %208, %209 : vector<8x128xf32>
    %c32_i32_80 = arith.constant 32 : i32
    %211 = tpu.dynamic_rotate %210 by %c32_i32_80 dim 1 : vector<8x128xf32>, i32 -> vector<8x128xf32>
    %212 = arith.addf %210, %211 : vector<8x128xf32>
    %213 = vector.extract_strided_slice %212 {offsets = [0, 0], sizes = [8, 32], strides = [1, 1]} : vector<8x128xf32> to vector<8x32xf32>
    %214 = vector.extract_strided_slice %213 {offsets = [0, 0], sizes = [8, 16], strides = [1, 1]} : vector<8x32xf32> to vector<8x16xf32>
    %215 = tpu.concatenate %78, %214, %62, %73 in 1 : vector<8x8xf32>, vector<8x16xf32>, vector<8x8xf32>, vector<8x8xf32> -> vector<8x40xf32>
    %cst_81 = arith.constant 0.000000e+00 : f32
    %216 = vector.broadcast %cst_81 : f32 to vector<8x88xf32>
    %217 = tpu.concatenate %215, %216 in 1 : vector<8x40xf32>, vector<8x88xf32> -> vector<8x128xf32>
    %c0_82 = arith.constant 0 : index
    %c0_83 = arith.constant 0 : index
    %218 = vector.load %arg5[%c0_82, %c0_83] : memref<8x128xf32, #tpu.memory_space<vmem>>, vector<8x128xf32>
    tpu.vector_store %arg5[%c0_82, %c0_83], %217 {strides = array<i32>} : memref<8x128xf32, #tpu.memory_space<vmem>>, vector<8x128xf32>,
    return
  }
  func.func @transform_0(%arg0: i32) -> (i32, i32) {
    %c0_i32 = arith.constant 0 : i32
    %c0_i32_0 = arith.constant 0 : i32
    return %arg0, %c0_i32 : i32, i32
  }
  func.func @transform_1(%arg0: i32) -> (i32, i32) {
    %c0_i32 = arith.constant 0 : i32
    %c0_i32_0 = arith.constant 0 : i32
    %c0_i32_1 = arith.constant 0 : i32
    return %c0_i32, %c0_i32_0 : i32, i32
  }
  func.func @transform_2(%arg0: i32) -> (i32, i32) {
    %c0_i32 = arith.constant 0 : i32
    %c0_i32_0 = arith.constant 0 : i32
    %c0_i32_1 = arith.constant 0 : i32
    return %c0_i32, %c0_i32_0 : i32, i32
  }
  func.func @transform_3(%arg0: i32) -> (i32, i32) {
    %c0_i32 = arith.constant 0 : i32
    %c0_i32_0 = arith.constant 0 : i32
    %c0_i32_1 = arith.constant 0 : i32
    return %c0_i32, %c0_i32_0 : i32, i32
  }
  func.func @transform_4(%arg0: i32) -> (i32, i32) {
    %c0_i32 = arith.constant 0 : i32
    %c0_i32_0 = arith.constant 0 : i32
    return %arg0, %c0_i32 : i32, i32
  }
}

</mosaic_0001>

<llo_original>
// kernel: tpu_custom_call.1
$region0: #{tpu_custom_call.1}
  #allocation0 [shape = 'u32[]', space=smem, size = 0x4, offset = 0x4, fixed_abs, tag = 'smem constant byte address 0x4 - core index']
  #allocation1 [shape = 'u32[144,128]{1,0:T(1,128)}', space=vmem, size = 0x12000, scoped, tag = 'internal scratch']
  %s0 = inlined_call_operand.hbm [shape: f32[16,32], index: 0, kind: input, shape index: {}]
  %s1 = inlined_call_operand.hbm [shape: f32[672,128], index: 1, kind: input, shape index: {}]
  %s2 = inlined_call_operand.hbm [shape: f32[8,8], index: 2, kind: input, shape index: {}]
  %s3 = inlined_call_operand.hbm [shape: f32[8,8], index: 3, kind: input, shape index: {}]
  %s4 = inlined_call_operand.hbm [shape: f32[16,128], index: 4, kind: output, shape index: {}]
  %s5 = sld [smem:[#allocation0]]
  $region65: #{tpu_custom_call.1} parent=0
    _
  %s7 = ssub.s32 1, %s5
  %s8 = scalar_select 0, %s7, %s5
  $region1: #{tpu_custom_call.1} parent=0
    #allocation2 [shape = 'u8[8192]{0}', space=vmem, size = 0x2000, scoped, tag = 'input window, operand 0']
    #allocation3 [shape = 's32[2]{0}', space=sflag, size = 0x8, scoped, tag = 'scoped memory for tpu_custom_call.1']
    #allocation4 [shape = 's32[2]{0}', space=sflag, size = 0x8, scoped, tag = 'scoped memory for tpu_custom_call.1']
    #allocation5 [shape = 'u8[344064]{0}', space=vmem, size = 0x54000, scoped, tag = 'input window, operand 1, single buffered']
    #allocation6 [shape = 's32[1]{0}', space=sflag, size = 0x4, scoped, tag = 'scoped memory for tpu_custom_call.1']
    #allocation7 [shape = 'u8[4096]{0}', space=vmem, size = 0x1000, scoped, tag = 'input window, operand 2, single buffered']
    #allocation8 [shape = 'u8[4096]{0}', space=vmem, size = 0x1000, scoped, tag = 'input window, operand 3, single buffered']
    #allocation9 [shape = 's32[1]{0}', space=sflag, size = 0x4, scoped, tag = 'scoped memory for tpu_custom_call.1']
    #allocation10 [shape = 'u8[8192]{0}', space=vmem, size = 0x2000, scoped, tag = 'output window, operand 0']
    %9 = vsyncpa [#allocation3], 0
    %s10 = scalar_lea.sflag [#allocation3], 1
    %11 = vsyncpa %s10, 0
    %12 = vsyncpa [#allocation6], 0
    %13 = vsyncpa [#allocation9], 0
    %14 = vsyncpa [#allocation4], 0
    %s15 = scalar_lea.sflag [#allocation4], 1
    %16 = vsyncpa %s15, 0
    loop: start=0, step=1, limit=4
    $region2: #{tpu_custom_call.1} parent=1 // loop_pre_header
      _
    $region3: #{tpu_custom_call.1} parent=1 // loop_header
      %s18 = sphi 0, %s22
      %p19 = scmp.ge.s32.totalorder %s18, 4
      %s28 = sphi 0, %s30
      %s31 = sphi 0, %s28
      %s32 = sphi 0, %s31
      %s48 = sphi 0, %s32
      %s52 = sphi 0, %s52
      %s54 = sphi 0, %s52
      %s55 = sphi 0, %s54
      %s69 = sphi 0, %s55
      %s73 = sphi 0, %s73
      %s75 = sphi 0, %s73
      %s76 = sphi 0, %s75
      %s90 = sphi 0, %s76
      %s94 = sphi 0, %s94
      %s96 = sphi 0, %s94
      %s97 = sphi 0, %s96
      %s111 = sphi 0, %s97
      %s117 = sphi 0, %s119
      %s120 = sphi 0, %s117
      %s121 = sphi 0, %s120
      %s137 = sphi 0, %s121
    $region4: #{tpu_custom_call.1} parent=1 // loop_header_branch
      %21 = sbr.rel (%p19) target = $region8
    $region5: #{tpu_custom_call.1} parent=1 // loop_body
      %s23 = ssub.s32 %s18, 1
      %s24 = ssub.s32 %s18, 2
      %s25 = sadd.s32 %s18, 1
      %s26 = ssub.s32 %s18, %s25
      %p27 = scmp.eq.s32.totalorder %s26, 0
      %s29 = sadd.s32 %s28, 1
      %s30 = scalar_select %p27, %s28, %s29
      %p33 = pneg %p27
      %p34 = scmp.eq.s32.totalorder %s18, 1
      %p35 = por %p33, %p34
      %p36 = scmp.ne.s32.totalorder %s28, %s31
      %p37 = scmp.eq.s32.totalorder %s18, 0
      %p38 = por %p36, %p37
      %p39 = scmp.ne.s32.totalorder %s28, %s31
      %p40 = scmp.eq.s32.totalorder %s23, 1
      %p41 = por %p39, %p40
      %p42 = scmp.ne.s32.totalorder %s31, %s32
      %p43 = scmp.eq.s32.totalorder %s23, 0
      %p44 = por %p42, %p43
      %p45 = scmp.ne.s32.totalorder %s31, %s32
      %p46 = scmp.eq.s32.totalorder %s24, 1
      %p47 = por %p45, %p46
      %p49 = scmp.ne.s32.totalorder %s32, %s48
      %p50 = scmp.eq.s32.totalorder %s24, 0
      %p51 = por %p49, %p50
      %s53 = sadd.s32 %s52, 1
      %p56 = scmp.eq.s32.totalorder %s18, 1
      %p57 = scmp.ne.s32.totalorder %s52, %s54
      %p58 = scmp.eq.s32.totalorder %s18, 0
      %p59 = por %p57, %p58
      %p60 = scmp.ne.s32.totalorder %s52, %s54
      %p61 = scmp.eq.s32.totalorder %s23, 1
      %p62 = por %p60, %p61
      %p63 = scmp.ne.s32.totalorder %s54, %s55
      %p64 = scmp.eq.s32.totalorder %s23, 0
      %p65 = por %p63, %p64
      %p66 = scmp.ne.s32.totalorder %s54, %s55
      %p67 = scmp.eq.s32.totalorder %s24, 1
      %p68 = por %p66, %p67
      %p70 = scmp.ne.s32.totalorder %s55, %s69
      %p71 = scmp.eq.s32.totalorder %s24, 0
      %p72 = por %p70, %p71
      %s74 = sadd.s32 %s73, 1
      %p77 = scmp.eq.s32.totalorder %s18, 1
      %p78 = scmp.ne.s32.totalorder %s73, %s75
      %p79 = scmp.eq.s32.totalorder %s18, 0
      %p80 = por %p78, %p79
      %p81 = scmp.ne.s32.totalorder %s73, %s75
      %p82 = scmp.eq.s32.totalorder %s23, 1
      %p83 = por %p81, %p82
      %p84 = scmp.ne.s32.totalorder %s75, %s76
      %p85 = scmp.eq.s32.totalorder %s23, 0
      %p86 = por %p84, %p85
      %p87 = scmp.ne.s32.totalorder %s75, %s76
      %p88 = scmp.eq.s32.totalorder %s24, 1
      %p89 = por %p87, %p88
      %p91 = scmp.ne.s32.totalorder %s76, %s90
      %p92 = scmp.eq.s32.totalorder %s24, 0
      %p93 = por %p91, %p92
      %s95 = sadd.s32 %s94, 1
      %p98 = scmp.eq.s32.totalorder %s18, 1
      %p99 = scmp.ne.s32.totalorder %s94, %s96
      %p100 = scmp.eq.s32.totalorder %s18, 0
      %p101 = por %p99, %p100
      %p102 = scmp.ne.s32.totalorder %s94, %s96
      %p103 = scmp.eq.s32.totalorder %s23, 1
      %p104 = por %p102, %p103
      %p105 = scmp.ne.s32.totalorder %s96, %s97
      %p106 = scmp.eq.s32.totalorder %s23, 0
      %p107 = por %p105, %p106
      %p108 = scmp.ne.s32.totalorder %s96, %s97
      %p109 = scmp.eq.s32.totalorder %s24, 1
      %p110 = por %p108, %p109
      %p112 = scmp.ne.s32.totalorder %s97, %s111
      %p113 = scmp.eq.s32.totalorder %s24, 0
      %p114 = por %p112, %p113
      %s115 = ssub.s32 %s18, %s25
      %p116 = scmp.eq.s32.totalorder %s115, 0
      %s118 = sadd.s32 %s117, 1
      %s119 = scalar_select %p116, %s117, %s118
      %p122 = pneg %p116
      %p123 = scmp.eq.s32.totalorder %s18, 1
      %p124 = por %p122, %p123
      %p125 = scmp.ne.s32.totalorder %s117, %s120
      %p126 = scmp.eq.s32.totalorder %s18, 0
      %p127 = por %p125, %p126
      %p128 = scmp.ne.s32.totalorder %s117, %s120
      %p129 = scmp.eq.s32.totalorder %s23, 1
      %p130 = por %p128, %p129
      %p131 = scmp.ne.s32.totalorder %s120, %s121
      %p132 = scmp.eq.s32.totalorder %s23, 0
      %p133 = por %p131, %p132
      %p134 = scmp.ne.s32.totalorder %s120, %s121
      %p135 = scmp.eq.s32.totalorder %s24, 1
      %p136 = por %p134, %p135
      %p138 = scmp.ne.s32.totalorder %s121, %s137
      %p139 = scmp.eq.s32.totalorder %s24, 0
      %p140 = por %p138, %p139
      %p141 = scmp.le.s32.totalorder 1, %s18
      %p142 = scmp.lt.s32.totalorder %s18, 3
      %p143 = pnand %p141, %p142
      %p144 = pneg %p143
      // Predicated region
      $region9: #{tpu_custom_call.1} parent=5 // pred_check
        _
      $region10: #{tpu_custom_call.1} parent=5 // pred_check_branch
        %146 = sbr.rel (%p143) target = $region12
      $region11: #{tpu_custom_call.1} parent=5 // pred_region
        %s147 = ssub.s32 %s18, 1
        // Predicated region
        $region13: #{tpu_custom_call.1} parent=11 // pred_check
          %p148 = pneg %p65
        $region14: #{tpu_custom_call.1} parent=11 // pred_check_branch
          %150 = sbr.rel (%p148) target = $region16
        $region15: #{tpu_custom_call.1} parent=11 // pred_region
          %s152 = ssub.s32 10752, 10752
          %153 = vsyncadd [#allocation6], %s152
          %s154 = sshll.u32 [#allocation5], 4
          %s155 = int_to_ptr.vmem [resolvable:$true] %s154
          %160 = dma.hbm_to_vmem [thread:$0]  %s1, 10752, %s155, [#allocation6], 128, 128, 8
        $region16: #{tpu_custom_call.1} parent=11 // pred_fallthru
          _
        // Predicated region
        $region17: #{tpu_custom_call.1} parent=11 // pred_check
          %p161 = pneg %p86
        $region18: #{tpu_custom_call.1} parent=11 // pred_check_branch
          %163 = sbr.rel (%p161) target = $region20
        $region19: #{tpu_custom_call.1} parent=11 // pred_region
          %s165 = ssub.s32 128, 128
          %166 = vsyncadd [#allocation6], %s165
          %s168 = sshll.u32 [#allocation7], 4
          %s169 = int_to_ptr.vmem [resolvable:$true] %s168
          %171 = dma.hbm_to_vmem [thread:$0]  %s2, 128, %s169, [#allocation6]
        $region20: #{tpu_custom_call.1} parent=11 // pred_fallthru
          _
        // Predicated region
        $region21: #{tpu_custom_call.1} parent=11 // pred_check
          %p172 = pneg %p107
        $region22: #{tpu_custom_call.1} parent=11 // pred_check_branch
          %174 = sbr.rel (%p172) target = $region24
        $region23: #{tpu_custom_call.1} parent=11 // pred_region
          %s176 = ssub.s32 128, 128
          %177 = vsyncadd [#allocation9], %s176
          %s179 = sshll.u32 [#allocation8], 4
          %s180 = int_to_ptr.vmem [resolvable:$true] %s179
          %182 = dma.hbm_to_vmem [thread:$0]  %s3, 128, %s180, [#allocation9]
        $region24: #{tpu_custom_call.1} parent=11 // pred_fallthru
          _
      $region12: #{tpu_custom_call.1} parent=5 // pred_fallthru
        _
      %p183 = scmp.lt.s32.totalorder %s18, 2
      // Predicated region
      $region25: #{tpu_custom_call.1} parent=5 // pred_check
        %p184 = pneg %p183
      $region26: #{tpu_custom_call.1} parent=5 // pred_check_branch
        %186 = sbr.rel (%p184) target = $region28
      $region27: #{tpu_custom_call.1} parent=5 // pred_region
        // Predicated region
        $region29: #{tpu_custom_call.1} parent=27 // pred_check
          %p187 = pneg %p38
        $region30: #{tpu_custom_call.1} parent=27 // pred_check_branch
          %189 = sbr.rel (%p187) target = $region32
        $region31: #{tpu_custom_call.1} parent=27 // pred_region
          %s190 = sand.u32 %s28, 1
          %s191 = scalar_lea.sflag [#allocation3], %s190
          %s192 = sand.u32 %s28, 1
          %s193 = smul.addr %s192, 8
          %s194 = scalar_lea.vmem [#allocation2], %s193
          %s196 = ssub.s32 128, 128
          %197 = vsyncadd %s191, %s196
          %s198 = smul.addr %s18, 128
          %s199 = scalar_lea.hbm %s0, %s198
          %s201 = sshll.u32 %s194, 4
          %s202 = int_to_ptr.vmem [resolvable:$true] %s201
          %204 = dma.hbm_to_vmem [thread:$0]  %s199, 128, %s202, %s191
        $region32: #{tpu_custom_call.1} parent=27 // pred_fallthru
          _
      $region28: #{tpu_custom_call.1} parent=5 // pred_fallthru
        _
      %p205 = scmp.le.s32.totalorder 1, %s18
      %p206 = scmp.lt.s32.totalorder %s18, 3
      %p207 = pnand %p205, %p206
      %p208 = pneg %p207
      // Predicated region
      $region33: #{tpu_custom_call.1} parent=5 // pred_check
        _
      $region34: #{tpu_custom_call.1} parent=5 // pred_check_branch
        %210 = sbr.rel (%p207) target = $region36
      $region35: #{tpu_custom_call.1} parent=5 // pred_region
        %s211 = ssub.s32 %s18, 1
        %s212 = sand.u32 %s31, 1
        %s213 = scalar_lea.sflag [#allocation3], %s212
        %s214 = sand.u32 %s31, 1
        %s215 = smul.addr %s214, 8
        %s216 = scalar_lea.vmem [#allocation2], %s215
        // Predicated region
        $region37: #{tpu_custom_call.1} parent=35 // pred_check
          %p217 = pneg %p44
        $region38: #{tpu_custom_call.1} parent=35 // pred_check_branch
          %219 = sbr.rel (%p217) target = $region40
        $region39: #{tpu_custom_call.1} parent=35 // pred_region
          %220 = dma.done %s213, 128
        $region40: #{tpu_custom_call.1} parent=35 // pred_fallthru
          _
        // Predicated region
        $region41: #{tpu_custom_call.1} parent=35 // pred_check
          %p221 = pneg %p65
        $region42: #{tpu_custom_call.1} parent=35 // pred_check_branch
          %223 = sbr.rel (%p221) target = $region44
        $region43: #{tpu_custom_call.1} parent=35 // pred_region
          %224 = dma.done [#allocation6], 10752
        $region44: #{tpu_custom_call.1} parent=35 // pred_fallthru
          _
        // Predicated region
        $region45: #{tpu_custom_call.1} parent=35 // pred_check
          %p225 = pneg %p86
        $region46: #{tpu_custom_call.1} parent=35 // pred_check_branch
          %227 = sbr.rel (%p225) target = $region48
        $region47: #{tpu_custom_call.1} parent=35 // pred_region
          %228 = dma.done [#allocation6], 128
        $region48: #{tpu_custom_call.1} parent=35 // pred_fallthru
          _
        // Predicated region
        $region49: #{tpu_custom_call.1} parent=35 // pred_check
          %p229 = pneg %p107
        $region50: #{tpu_custom_call.1} parent=35 // pred_check_branch
          %231 = sbr.rel (%p229) target = $region52
        $region51: #{tpu_custom_call.1} parent=35 // pred_region
          %232 = dma.done [#allocation9], 128
        $region52: #{tpu_custom_call.1} parent=35 // pred_fallthru
          _
        %s233 = sand.u32 %s31, 1
        %s234 = scalar_lea.sflag [#allocation3], %s233
        %s235 = sand.u32 %s31, 1
        %s236 = smul.addr %s235, 8
        %s237 = scalar_lea.vmem [#allocation2], %s236
        %p238 = pneg %p44
        %p239 = pneg %p41
        %p240 = pneg %p65
        %p241 = pneg %p62
        %p242 = pneg %p86
        %p243 = pneg %p83
        %p244 = pneg %p107
        %p245 = pneg %p104
        %p246 = pneg %p133
        %p247 = pneg %p130
        %s248 = sand.u32 %s120, 1
        %s249 = scalar_lea.sflag [#allocation4], %s248
        %s250 = sand.u32 %s120, 1
        %s251 = smul.addr %s250, 8
        %s252 = scalar_lea.vmem [#allocation10], %s251
        %v254 = vld [vmem:[%s216] sm:$0xff]
        %v255 = vmul.f32 %v254, 0.99995
        %v256 = vmax.f32 %v255, -5.0
        %v257 = vmin.f32 %v256, 5.0
        %vm258 = vcmp.ne.f32.partialorder %v254, %v254
        %v259 = vsel %vm258, 0.0, %v257
        %vm260 = vcmask 130048
        %v261 = vsel %vm260, %v257, %v259
        %v262 = vld [vmem:[#allocation5] sm:$0xff]
        %v263 = vld [vmem:[#allocation5 + $0x8] sm:$0xff]
        %v264 = vld [vmem:[#allocation5 + $0x10] sm:$0xff]
        %v265 = vpack.c.bf16 %v261, %v261
        %v266 = vpack.c.bf16 %v263, %v262
        %v267 = vpack.c.bf16 %v264, %v264
        %v268 = vld [vmem:[#allocation5 + $0x18] sm:$0x1]
        %v269 = vlaneseq
        %v270 = vshrl.u32 %v269, 7
        %v271 = vsub.s32 0, %v270
        %v272 = vrot.slane %v268, %v271
        %vm273 = vcmask 195584
        %v275 = vsel %vm273, %v265, 0
        %vm277 = vcmask 1043456
        %v279 = vsel %vm277, %v267, 0
        %281 = vmatprep.subr.bf16.mxu0 0
        %282 = vmatpush1.bf16.msra.mxu0 0
        %283 = vmatprep.subr.bf16.mxu0 0
        %284 = vmatpush1.bf16.msra.mxu0 0
        %285 = vmatprep.subr.bf16.mxu0 0
        %286 = vmatpush1.bf16.msra.mxu0 0
        %287 = vmatprep.subr.bf16.mxu0 0
        %288 = vmatpush1.bf16.msra.mxu0 0
        %289 = vmatprep.subr.bf16.mxu0 0
        %290 = vmatpush1.bf16.msra.mxu0 0
        %291 = vmatprep.subr.bf16.mxu0 0
        %292 = vmatpush1.bf16.msra.mxu0 0
        %293 = vmatprep.subr.bf16.mxu0 0
        %294 = vmatpush1.bf16.msra.mxu0 %v279
        %295 = vmatprep.subr.bf16.mxu0 0
        %296 = vmatpush1.bf16.msra.mxu0 %v266
        %297 = vmatprep.subr.bf16.mxu0 0
        %298 = vmatpush2.bf16.msra.mxu0 0
        %299 = vmatprep.subr.bf16.mxu0 0
        %300 = vmatpush2.bf16.msra.mxu0 0
        %301 = vmatprep.subr.bf16.mxu0 0
        %302 = vmatpush2.bf16.msra.mxu0 0
        %303 = vmatprep.subr.bf16.mxu0 0
        %304 = vmatpush2.bf16.msra.mxu0 0
        %305 = vmatprep.subr.bf16.mxu0 0
        %306 = vmatpush2.bf16.msra.mxu0 0
        %307 = vmatprep.subr.bf16.mxu0 0
        %308 = vmatpush2.bf16.msra.mxu0 0
        %309 = vmatprep.subr.bf16.mxu0 0
        %310 = vmatpush2.bf16.msra.mxu0 0
        %311 = vmatprep.subr.bf16.mxu0 0
        %312 = vmatpush2.bf16.msra.mxu0 0
        %313 = vmatprep.mubr.bf16.mxu0 0
        %314 = vmatmul.mubr.bf16.gmra.mxu0 %v275
        %v315 = vpop.f32.mrf.mxu0
        %v316 = vadd.f32 %v272, %v315
        %v317 = vpop.f32.mrf.mxu0
        %v318 = vpop.f32.mrf.mxu0
        %v319 = vpop.f32.mrf.mxu0
        %320 = vdwg.mxu0
        %322 = vrot.lane.b32.xlu0 %v259, 112
        %v323 = vpop.permute.xlu0 %322
        %326 = vrot.lane.b32.xlu0 %v316, 8
        %v327 = vpop.permute.xlu0 %326
        %vm329 = vcmask 64512
        %v330 = vsel %vm329, %v323, %v327
        %v331 = vld [vmem:[#allocation5 + $0x20] sm:$0xff]
        %v332 = vld [vmem:[#allocation5 + $0x28] sm:$0xff]
        %v333 = vld [vmem:[#allocation5 + $0x30] sm:$0xff]
        %v334 = vld [vmem:[#allocation5 + $0x38] sm:$0xff]
        %v335 = vld [vmem:[#allocation5 + $0x40] sm:$0xff]
        %v336 = vpack.c.bf16 %v330, %v330
        %v337 = vpack.c.bf16 %v332, %v331
        %v338 = vpack.c.bf16 %v334, %v333
        %v339 = vpack.c.bf16 %v335, %v335
        %v340 = vld [vmem:[#allocation5 + $0x48] sm:$0x1]
        %v341 = vlaneseq
        %v342 = vshrl.u32 %v341, 7
        %v343 = vsub.s32 0, %v342
        %v344 = vrot.slane %v340, %v343
        %vm345 = vcmask 326656
        %v347 = vsel %vm345, %v336, 0
        %v350 = vsel %vm277, %v339, 0
        %352 = vmatprep.subr.bf16.mxu0 0
        %353 = vmatpush1.bf16.msra.mxu0 0
        %354 = vmatprep.subr.bf16.mxu0 0
        %355 = vmatpush1.bf16.msra.mxu0 0
        %356 = vmatprep.subr.bf16.mxu0 0
        %357 = vmatpush1.bf16.msra.mxu0 0
        %358 = vmatprep.subr.bf16.mxu0 0
        %359 = vmatpush1.bf16.msra.mxu0 0
        %360 = vmatprep.subr.bf16.mxu0 0
        %361 = vmatpush1.bf16.msra.mxu0 0
        %362 = vmatprep.subr.bf16.mxu0 0
        %363 = vmatpush1.bf16.msra.mxu0 %v350
        %364 = vmatprep.subr.bf16.mxu0 0
        %365 = vmatpush1.bf16.msra.mxu0 %v338
        %366 = vmatprep.subr.bf16.mxu0 0
        %367 = vmatpush1.bf16.msra.mxu0 %v337
        %368 = vmatprep.subr.bf16.mxu0 0
        %369 = vmatpush2.bf16.msra.mxu0 0
        %370 = vmatprep.subr.bf16.mxu0 0
        %371 = vmatpush2.bf16.msra.mxu0 0
        %372 = vmatprep.subr.bf16.mxu0 0
        %373 = vmatpush2.bf16.msra.mxu0 0
        %374 = vmatprep.subr.bf16.mxu0 0
        %375 = vmatpush2.bf16.msra.mxu0 0
        %376 = vmatprep.subr.bf16.mxu0 0
        %377 = vmatpush2.bf16.msra.mxu0 0
        %378 = vmatprep.subr.bf16.mxu0 0
        %379 = vmatpush2.bf16.msra.mxu0 0
        %380 = vmatprep.subr.bf16.mxu0 0
        %381 = vmatpush2.bf16.msra.mxu0 0
        %382 = vmatprep.subr.bf16.mxu0 0
        %383 = vmatpush2.bf16.msra.mxu0 0
        %384 = vmatprep.mubr.bf16.mxu0 0
        %385 = vmatmul.mubr.bf16.gmra.mxu0 %v347
        %v386 = vpop.f32.mrf.mxu0
        %v387 = vadd.f32 %v344, %v386
        %v388 = vpop.f32.mrf.mxu0
        %v389 = vpop.f32.mrf.mxu0
        %v390 = vpop.f32.mrf.mxu0
        %391 = vdwg.mxu0
        %393 = vrot.lane.b32.xlu0 %v387, 8
        %v394 = vpop.permute.xlu0 %393
        %v396 = vsel %vm329, %v323, %v394
        %v397 = vld [vmem:[#allocation5 + $0x50] sm:$0xff]
        %v398 = vld [vmem:[#allocation5 + $0x58] sm:$0xff]
        %v399 = vld [vmem:[#allocation5 + $0x60] sm:$0xff]
        %v400 = vld [vmem:[#allocation5 + $0x68] sm:$0xff]
        %v401 = vld [vmem:[#allocation5 + $0x70] sm:$0xff]
        %v402 = vpack.c.bf16 %v396, %v396
        %v403 = vpack.c.bf16 %v398, %v397
        %v404 = vpack.c.bf16 %v400, %v399
        %v405 = vpack.c.bf16 %v401, %v401
        %v406 = vld [vmem:[#allocation5 + $0x78] sm:$0x1]
        %v407 = vlaneseq
        %v408 = vshrl.u32 %v407, 7
        %v409 = vsub.s32 0, %v408
        %v410 = vrot.slane %v406, %v409
        %v412 = vsel %vm345, %v402, 0
        %v415 = vsel %vm277, %v405, 0
        %417 = vmatprep.subr.bf16.mxu0 0
        %418 = vmatpush1.bf16.msra.mxu0 0
        %419 = vmatprep.subr.bf16.mxu0 0
        %420 = vmatpush1.bf16.msra.mxu0 0
        %421 = vmatprep.subr.bf16.mxu0 0
        %422 = vmatpush1.bf16.msra.mxu0 0
        %423 = vmatprep.subr.bf16.mxu0 0
        %424 = vmatpush1.bf16.msra.mxu0 0
        %425 = vmatprep.subr.bf16.mxu0 0
        %426 = vmatpush1.bf16.msra.mxu0 0
        %427 = vmatprep.subr.bf16.mxu0 0
        %428 = vmatpush1.bf16.msra.mxu0 %v415
        %429 = vmatprep.subr.bf16.mxu0 0
        %430 = vmatpush1.bf16.msra.mxu0 %v404
        %431 = vmatprep.subr.bf16.mxu0 0
        %432 = vmatpush1.bf16.msra.mxu0 %v403
        %433 = vmatprep.subr.bf16.mxu0 0
        %434 = vmatpush2.bf16.msra.mxu0 0
        %435 = vmatprep.subr.bf16.mxu0 0
        %436 = vmatpush2.bf16.msra.mxu0 0
        %437 = vmatprep.subr.bf16.mxu0 0
        %438 = vmatpush2.bf16.msra.mxu0 0
        %439 = vmatprep.subr.bf16.mxu0 0
        %440 = vmatpush2.bf16.msra.mxu0 0
        %441 = vmatprep.subr.bf16.mxu0 0
        %442 = vmatpush2.bf16.msra.mxu0 0
        %443 = vmatprep.subr.bf16.mxu0 0
        %444 = vmatpush2.bf16.msra.mxu0 0
        %445 = vmatprep.subr.bf16.mxu0 0
        %446 = vmatpush2.bf16.msra.mxu0 0
        %447 = vmatprep.subr.bf16.mxu0 0
        %448 = vmatpush2.bf16.msra.mxu0 0
        %449 = vmatprep.mubr.bf16.mxu0 0
        %450 = vmatmul.mubr.bf16.gmra.mxu0 %v412
        %v451 = vpop.f32.mrf.mxu0
        %v452 = vadd.f32 %v410, %v451
        %v453 = vpop.f32.mrf.mxu0
        %v454 = vpop.f32.mrf.mxu0
        %v455 = vpop.f32.mrf.mxu0
        %456 = vdwg.mxu0
        %458 = vrot.lane.b32.xlu0 %v452, 8
        %v459 = vpop.permute.xlu0 %458
        %v461 = vsel %vm329, %v323, %v459
        %v462 = vld [vmem:[#allocation5 + $0x80] sm:$0xff]
        %v463 = vld [vmem:[#allocation5 + $0x88] sm:$0xff]
        %v464 = vld [vmem:[#allocation5 + $0x90] sm:$0xff]
        %v465 = vld [vmem:[#allocation5 + $0x98] sm:$0xff]
        %v466 = vld [vmem:[#allocation5 + $0xa0] sm:$0xff]
        %v467 = vpack.c.bf16 %v461, %v461
        %v468 = vpack.c.bf16 %v463, %v462
        %v469 = vpack.c.bf16 %v465, %v464
        %v470 = vpack.c.bf16 %v466, %v466
        %v471 = vld [vmem:[#allocation5 + $0xa8] sm:$0x1]
        %v472 = vlaneseq
        %v473 = vshrl.u32 %v472, 7
        %v474 = vsub.s32 0, %v473
        %v475 = vrot.slane %v471, %v474
        %v477 = vsel %vm345, %v467, 0
        %v480 = vsel %vm277, %v470, 0
        %482 = vmatprep.subr.bf16.mxu0 0
        %483 = vmatpush1.bf16.msra.mxu0 0
        %484 = vmatprep.subr.bf16.mxu0 0
        %485 = vmatpush1.bf16.msra.mxu0 0
        %486 = vmatprep.subr.bf16.mxu0 0
        %487 = vmatpush1.bf16.msra.mxu0 0
        %488 = vmatprep.subr.bf16.mxu0 0
        %489 = vmatpush1.bf16.msra.mxu0 0
        %490 = vmatprep.subr.bf16.mxu0 0
        %491 = vmatpush1.bf16.msra.mxu0 0
        %492 = vmatprep.subr.bf16.mxu0 0
        %493 = vmatpush1.bf16.msra.mxu0 %v480
        %494 = vmatprep.subr.bf16.mxu0 0
        %495 = vmatpush1.bf16.msra.mxu0 %v469
        %496 = vmatprep.subr.bf16.mxu0 0
        %497 = vmatpush1.bf16.msra.mxu0 %v468
        %498 = vmatprep.subr.bf16.mxu0 0
        %499 = vmatpush2.bf16.msra.mxu0 0
        %500 = vmatprep.subr.bf16.mxu0 0
        %501 = vmatpush2.bf16.msra.mxu0 0
        %502 = vmatprep.subr.bf16.mxu0 0
        %503 = vmatpush2.bf16.msra.mxu0 0
        %504 = vmatprep.subr.bf16.mxu0 0
        %505 = vmatpush2.bf16.msra.mxu0 0
        %506 = vmatprep.subr.bf16.mxu0 0
        %507 = vmatpush2.bf16.msra.mxu0 0
        %508 = vmatprep.subr.bf16.mxu0 0
        %509 = vmatpush2.bf16.msra.mxu0 0
        %510 = vmatprep.subr.bf16.mxu0 0
        %511 = vmatpush2.bf16.msra.mxu0 0
        %512 = vmatprep.subr.bf16.mxu0 0
        %513 = vmatpush2.bf16.msra.mxu0 0
        %514 = vmatprep.mubr.bf16.mxu0 0
        %515 = vmatmul.mubr.bf16.gmra.mxu0 %v477
        %v516 = vpop.f32.mrf.mxu0
        %v517 = vadd.f32 %v475, %v516
        %v518 = vpop.f32.mrf.mxu0
        %v519 = vpop.f32.mrf.mxu0
        %v520 = vpop.f32.mrf.mxu0
        %521 = vdwg.mxu0
        %vm522 = vcmp.ge.f32.partialorder %v517, 0.0
        %v523 = vmul.f32 %v517, 0.01
        %v524 = vsel %vm522, %v517, %v523
        %v525 = vld [vmem:[#allocation5 + $0xb0] sm:$0xff]
        %v526 = vld [vmem:[#allocation5 + $0xb8] sm:$0xff]
        %v527 = vld [vmem:[#allocation5 + $0xc0] sm:$0xff]
        %v528 = vld [vmem:[#allocation5 + $0xc8] sm:$0xff]
        %v529 = vpack.c.bf16 %v524, %v524
        %v530 = vpack.c.bf16 %v526, %v525
        %v531 = vpack.c.bf16 %v528, %v527
        %v532 = vld [vmem:[#allocation5 + $0xd0] sm:$0x1]
        %v533 = vlaneseq
        %v534 = vshrl.u32 %v533, 7
        %v535 = vsub.s32 0, %v534
        %v536 = vrot.slane %v532, %v535
        %vm537 = vcmask 261120
        %v539 = vsel %vm537, %v529, 0
        %541 = vmatprep.subr.bf16.mxu0 0
        %542 = vmatpush1.bf16.msra.mxu0 0
        %543 = vmatprep.subr.bf16.mxu0 0
        %544 = vmatpush1.bf16.msra.mxu0 0
        %545 = vmatprep.subr.bf16.mxu0 0
        %546 = vmatpush1.bf16.msra.mxu0 0
        %547 = vmatprep.subr.bf16.mxu0 0
        %548 = vmatpush1.bf16.msra.mxu0 0
        %549 = vmatprep.subr.bf16.mxu0 0
        %550 = vmatpush1.bf16.msra.mxu0 0
        %551 = vmatprep.subr.bf16.mxu0 0
        %552 = vmatpush1.bf16.msra.mxu0 0
        %553 = vmatprep.subr.bf16.mxu0 0
        %554 = vmatpush1.bf16.msra.mxu0 %v531
        %555 = vmatprep.subr.bf16.mxu0 0
        %556 = vmatpush1.bf16.msra.mxu0 %v530
        %557 = vmatprep.subr.bf16.mxu0 0
        %558 = vmatpush2.bf16.msra.mxu0 0
        %559 = vmatprep.subr.bf16.mxu0 0
        %560 = vmatpush2.bf16.msra.mxu0 0
        %561 = vmatprep.subr.bf16.mxu0 0
        %562 = vmatpush2.bf16.msra.mxu0 0
        %563 = vmatprep.subr.bf16.mxu0 0
        %564 = vmatpush2.bf16.msra.mxu0 0
        %565 = vmatprep.subr.bf16.mxu0 0
        %566 = vmatpush2.bf16.msra.mxu0 0
        %567 = vmatprep.subr.bf16.mxu0 0
        %568 = vmatpush2.bf16.msra.mxu0 0
        %569 = vmatprep.subr.bf16.mxu0 0
        %570 = vmatpush2.bf16.msra.mxu0 0
        %571 = vmatprep.subr.bf16.mxu0 0
        %572 = vmatpush2.bf16.msra.mxu0 0
        %573 = vmatprep.mubr.bf16.mxu0 0
        %574 = vmatmul.mubr.bf16.gmra.mxu0 %v539
        %v575 = vpop.f32.mrf.mxu0
        %v576 = vadd.f32 %v536, %v575
        %v577 = vpop.f32.mrf.mxu0
        %v578 = vpop.f32.mrf.mxu0
        %v579 = vpop.f32.mrf.mxu0
        %580 = vdwg.mxu0
        %v581 = vld [vmem:[#allocation5 + $0xd8] sm:$0xff]
        %v582 = vld [vmem:[#allocation5 + $0xe0] sm:$0xff]
        %v583 = vld [vmem:[#allocation5 + $0xe8] sm:$0xff]
        %v584 = vld [vmem:[#allocation5 + $0xf0] sm:$0xff]
        %v585 = vpack.c.bf16 %v582, %v581
        %v586 = vpack.c.bf16 %v584, %v583
        %v587 = vld [vmem:[#allocation5 + $0xf8] sm:$0x1]
        %v588 = vlaneseq
        %v589 = vshrl.u32 %v588, 7
        %v590 = vsub.s32 0, %v589
        %v591 = vrot.slane %v587, %v590
        %592 = vmatprep.subr.bf16.mxu0 0
        %593 = vmatpush1.bf16.msra.mxu0 0
        %594 = vmatprep.subr.bf16.mxu0 0
        %595 = vmatpush1.bf16.msra.mxu0 0
        %596 = vmatprep.subr.bf16.mxu0 0
        %597 = vmatpush1.bf16.msra.mxu0 0
        %598 = vmatprep.subr.bf16.mxu0 0
        %599 = vmatpush1.bf16.msra.mxu0 0
        %600 = vmatprep.subr.bf16.mxu0 0
        %601 = vmatpush1.bf16.msra.mxu0 0
        %602 = vmatprep.subr.bf16.mxu0 0
        %603 = vmatpush1.bf16.msra.mxu0 0
        %604 = vmatprep.subr.bf16.mxu0 0
        %605 = vmatpush1.bf16.msra.mxu0 %v586
        %606 = vmatprep.subr.bf16.mxu0 0
        %607 = vmatpush1.bf16.msra.mxu0 %v585
        %608 = vmatprep.subr.bf16.mxu0 0
        %609 = vmatpush2.bf16.msra.mxu0 0
        %610 = vmatprep.subr.bf16.mxu0 0
        %611 = vmatpush2.bf16.msra.mxu0 0
        %612 = vmatprep.subr.bf16.mxu0 0
        %613 = vmatpush2.bf16.msra.mxu0 0
        %614 = vmatprep.subr.bf16.mxu0 0
        %615 = vmatpush2.bf16.msra.mxu0 0
        %616 = vmatprep.subr.bf16.mxu0 0
        %617 = vmatpush2.bf16.msra.mxu0 0
        %618 = vmatprep.subr.bf16.mxu0 0
        %619 = vmatpush2.bf16.msra.mxu0 0
        %620 = vmatprep.subr.bf16.mxu0 0
        %621 = vmatpush2.bf16.msra.mxu0 0
        %622 = vmatprep.subr.bf16.mxu0 0
        %623 = vmatpush2.bf16.msra.mxu0 0
        %624 = vmatprep.mubr.bf16.mxu0 0
        %625 = vmatmul.mubr.bf16.gmra.mxu0 %v539
        %v626 = vpop.f32.mrf.mxu0
        %v627 = vadd.f32 %v591, %v626
        %v628 = vpop.f32.mrf.mxu0
        %v629 = vpop.f32.mrf.mxu0
        %v630 = vpop.f32.mrf.mxu0
        %631 = vdwg.mxu0
        %v632 = vmax.f32 %v627, -5.0
        %v633 = vmin.f32 %v632, 5.0
        %v634 = vmul.f32 %v633, 0.5
        %v635 = vmul.f32 %v634, 1.442695
        %v636 = vpow.pop %v635
        %638 = vrot.lane.b32.xlu0 %v636, 24
        %v639 = vpop.permute.xlu0 %638
        %v641 = vmul.f32 %v254, %v639
        %643 = vrot.lane.b32.xlu0 %v641, 104
        %v644 = vpop.permute.xlu0 %643
        %v646 = vadd.f32 %v576, %v644
        %647 = vrot.lane.b32.xlu0 %v259, 120
        %v648 = vpop.permute.xlu0 %647
        %v650 = vsel %vm329, %v646, %v648
        %v651 = vld [vmem:[#allocation5 + $0x100] sm:$0xff]
        %v652 = vld [vmem:[#allocation5 + $0x108] sm:$0xff]
        %v653 = vpack.c.bf16 %v650, %v650
        %v654 = vpack.c.bf16 %v652, %v651
        %v655 = vld [vmem:[#allocation5 + $0x110] sm:$0x1]
        %v656 = vlaneseq
        %v657 = vshrl.u32 %v656, 7
        %v658 = vsub.s32 0, %v657
        %v659 = vrot.slane %v655, %v658
        %v661 = vsel %vm260, %v653, 0
        %663 = vmatprep.subr.bf16.mxu0 0
        %664 = vmatpush1.bf16.msra.mxu0 0
        %665 = vmatprep.subr.bf16.mxu0 0
        %666 = vmatpush1.bf16.msra.mxu0 0
        %667 = vmatprep.subr.bf16.mxu0 0
        %668 = vmatpush1.bf16.msra.mxu0 0
        %669 = vmatprep.subr.bf16.mxu0 0
        %670 = vmatpush1.bf16.msra.mxu0 0
        %671 = vmatprep.subr.bf16.mxu0 0
        %672 = vmatpush1.bf16.msra.mxu0 0
        %673 = vmatprep.subr.bf16.mxu0 0
        %674 = vmatpush1.bf16.msra.mxu0 0
        %675 = vmatprep.subr.bf16.mxu0 0
        %676 = vmatpush1.bf16.msra.mxu0 0
        %677 = vmatprep.subr.bf16.mxu0 0
        %678 = vmatpush1.bf16.msra.mxu0 %v654
        %679 = vmatprep.subr.bf16.mxu0 0
        %680 = vmatpush2.bf16.msra.mxu0 0
        %681 = vmatprep.subr.bf16.mxu0 0
        %682 = vmatpush2.bf16.msra.mxu0 0
        %683 = vmatprep.subr.bf16.mxu0 0
        %684 = vmatpush2.bf16.msra.mxu0 0
        %685 = vmatprep.subr.bf16.mxu0 0
        %686 = vmatpush2.bf16.msra.mxu0 0
        %687 = vmatprep.subr.bf16.mxu0 0
        %688 = vmatpush2.bf16.msra.mxu0 0
        %689 = vmatprep.subr.bf16.mxu0 0
        %690 = vmatpush2.bf16.msra.mxu0 0
        %691 = vmatprep.subr.bf16.mxu0 0
        %692 = vmatpush2.bf16.msra.mxu0 0
        %693 = vmatprep.subr.bf16.mxu0 0
        %694 = vmatpush2.bf16.msra.mxu0 0
        %695 = vmatprep.mubr.bf16.mxu0 0
        %696 = vmatmul.mubr.bf16.gmra.mxu0 %v661
        %v697 = vpop.f32.mrf.mxu0
        %v698 = vadd.f32 %v659, %v697
        %v699 = vpop.f32.mrf.mxu0
        %v700 = vpop.f32.mrf.mxu0
        %v701 = vpop.f32.mrf.mxu0
        %702 = vdwg.mxu0
        %vm703 = vcmp.ge.f32.partialorder %v698, 0.0
        %v704 = vmul.f32 %v698, 0.01
        %v705 = vsel %vm703, %v698, %v704
        %v706 = vld [vmem:[#allocation5 + $0x118] sm:$0xff]
        %v707 = vld [vmem:[#allocation5 + $0x120] sm:$0xff]
        %v708 = vld [vmem:[#allocation5 + $0x128] sm:$0xff]
        %v709 = vld [vmem:[#allocation5 + $0x130] sm:$0xff]
        %v710 = vld [vmem:[#allocation5 + $0x138] sm:$0xff]
        %v711 = vld [vmem:[#allocation5 + $0x140] sm:$0xff]
        %v712 = vld [vmem:[#allocation5 + $0x148] sm:$0xff]
        %v713 = vld [vmem:[#allocation5 + $0x150] sm:$0xff]
        %v714 = vpack.c.bf16 %v705, %v705
        %v715 = vpack.c.bf16 %v707, %v706
        %v716 = vpack.c.bf16 %v709, %v708
        %v717 = vpack.c.bf16 %v711, %v710
        %v718 = vpack.c.bf16 %v713, %v712
        %v719 = vld [vmem:[#allocation5 + $0x158] sm:$0x1]
        %v720 = vlaneseq
        %v721 = vshrl.u32 %v720, 7
        %v722 = vsub.s32 0, %v721
        %v723 = vrot.slane %v719, %v722
        %vm724 = vcmask 523264
        %v726 = vsel %vm724, %v714, 0
        %728 = vmatprep.subr.bf16.mxu0 0
        %729 = vmatpush1.bf16.msra.mxu0 0
        %730 = vmatprep.subr.bf16.mxu0 0
        %731 = vmatpush1.bf16.msra.mxu0 0
        %732 = vmatprep.subr.bf16.mxu0 0
        %733 = vmatpush1.bf16.msra.mxu0 0
        %734 = vmatprep.subr.bf16.mxu0 0
        %735 = vmatpush1.bf16.msra.mxu0 0
        %736 = vmatprep.subr.bf16.mxu0 0
        %737 = vmatpush1.bf16.msra.mxu0 %v718
        %738 = vmatprep.subr.bf16.mxu0 0
        %739 = vmatpush1.bf16.msra.mxu0 %v717
        %740 = vmatprep.subr.bf16.mxu0 0
        %741 = vmatpush1.bf16.msra.mxu0 %v716
        %742 = vmatprep.subr.bf16.mxu0 0
        %743 = vmatpush1.bf16.msra.mxu0 %v715
        %744 = vmatprep.subr.bf16.mxu0 0
        %745 = vmatpush2.bf16.msra.mxu0 0
        %746 = vmatprep.subr.bf16.mxu0 0
        %747 = vmatpush2.bf16.msra.mxu0 0
        %748 = vmatprep.subr.bf16.mxu0 0
        %749 = vmatpush2.bf16.msra.mxu0 0
        %750 = vmatprep.subr.bf16.mxu0 0
        %751 = vmatpush2.bf16.msra.mxu0 0
        %752 = vmatprep.subr.bf16.mxu0 0
        %753 = vmatpush2.bf16.msra.mxu0 0
        %754 = vmatprep.subr.bf16.mxu0 0
        %755 = vmatpush2.bf16.msra.mxu0 0
        %756 = vmatprep.subr.bf16.mxu0 0
        %757 = vmatpush2.bf16.msra.mxu0 0
        %758 = vmatprep.subr.bf16.mxu0 0
        %759 = vmatpush2.bf16.msra.mxu0 0
        %760 = vmatprep.mubr.bf16.mxu0 0
        %761 = vmatmul.mubr.bf16.gmra.mxu0 %v726
        %v762 = vpop.f32.mrf.mxu0
        %v763 = vadd.f32 %v723, %v762
        %v764 = vpop.f32.mrf.mxu0
        %v765 = vpop.f32.mrf.mxu0
        %v766 = vpop.f32.mrf.mxu0
        %767 = vdwg.mxu0
        %vm768 = vcmp.ge.f32.partialorder %v763, 0.0
        %v769 = vmul.f32 %v763, 0.01
        %v770 = vsel %vm768, %v763, %v769
        %v771 = vld [vmem:[#allocation5 + $0x160] sm:$0xff]
        %v772 = vld [vmem:[#allocation5 + $0x168] sm:$0xff]
        %v773 = vld [vmem:[#allocation5 + $0x170] sm:$0xff]
        %v774 = vld [vmem:[#allocation5 + $0x178] sm:$0xff]
        %v775 = vld [vmem:[#allocation5 + $0x180] sm:$0xff]
        %v776 = vld [vmem:[#allocation5 + $0x188] sm:$0xff]
        %v777 = vld [vmem:[#allocation5 + $0x190] sm:$0xff]
        %v778 = vld [vmem:[#allocation5 + $0x198] sm:$0xff]
        %v779 = vpack.c.bf16 %v770, %v770
        %v780 = vpack.c.bf16 %v772, %v771
        %v781 = vpack.c.bf16 %v774, %v773
        %v782 = vpack.c.bf16 %v776, %v775
        %v783 = vpack.c.bf16 %v778, %v777
        %v784 = vld [vmem:[#allocation5 + $0x1a0] sm:$0x1]
        %v785 = vlaneseq
        %v786 = vshrl.u32 %v785, 7
        %v787 = vsub.s32 0, %v786
        %v788 = vrot.slane %v784, %v787
        %v790 = vsel %vm724, %v779, 0
        %792 = vmatprep.subr.bf16.mxu0 0
        %793 = vmatpush1.bf16.msra.mxu0 0
        %794 = vmatprep.subr.bf16.mxu0 0
        %795 = vmatpush1.bf16.msra.mxu0 0
        %796 = vmatprep.subr.bf16.mxu0 0
        %797 = vmatpush1.bf16.msra.mxu0 0
        %798 = vmatprep.subr.bf16.mxu0 0
        %799 = vmatpush1.bf16.msra.mxu0 0
        %800 = vmatprep.subr.bf16.mxu0 0
        %801 = vmatpush1.bf16.msra.mxu0 %v783
        %802 = vmatprep.subr.bf16.mxu0 0
        %803 = vmatpush1.bf16.msra.mxu0 %v782
        %804 = vmatprep.subr.bf16.mxu0 0
        %805 = vmatpush1.bf16.msra.mxu0 %v781
        %806 = vmatprep.subr.bf16.mxu0 0
        %807 = vmatpush1.bf16.msra.mxu0 %v780
        %808 = vmatprep.subr.bf16.mxu0 0
        %809 = vmatpush2.bf16.msra.mxu0 0
        %810 = vmatprep.subr.bf16.mxu0 0
        %811 = vmatpush2.bf16.msra.mxu0 0
        %812 = vmatprep.subr.bf16.mxu0 0
        %813 = vmatpush2.bf16.msra.mxu0 0
        %814 = vmatprep.subr.bf16.mxu0 0
        %815 = vmatpush2.bf16.msra.mxu0 0
        %816 = vmatprep.subr.bf16.mxu0 0
        %817 = vmatpush2.bf16.msra.mxu0 0
        %818 = vmatprep.subr.bf16.mxu0 0
        %819 = vmatpush2.bf16.msra.mxu0 0
        %820 = vmatprep.subr.bf16.mxu0 0
        %821 = vmatpush2.bf16.msra.mxu0 0
        %822 = vmatprep.subr.bf16.mxu0 0
        %823 = vmatpush2.bf16.msra.mxu0 0
        %824 = vmatprep.mubr.bf16.mxu0 0
        %825 = vmatmul.mubr.bf16.gmra.mxu0 %v790
        %v826 = vpop.f32.mrf.mxu0
        %v827 = vadd.f32 %v788, %v826
        %v828 = vpop.f32.mrf.mxu0
        %v829 = vpop.f32.mrf.mxu0
        %v830 = vpop.f32.mrf.mxu0
        %831 = vdwg.mxu0
        %vm832 = vcmask 31744
        %v833 = vsel %vm832, %v827, -inf
        %834 = vmax.xlane.f32.xlu0 %v833
        %v835 = vpop.xlane.xlu0 %834
        %v836 = vsub.f32 %v827, %v835
        %v837 = vmul.f32 %v836, 1.442695
        %v838 = vpow.pop %v837
        %v839 = vsel %vm832, %v838, 0.0
        %840 = vadd.xlane.f32.xlu0 %v839
        %v841 = vpop.xlane.xlu0 %840
        %v842 = vrcp.pop %v841
        %v843 = vmul.f32 %v838, %v842
        %v844 = vld [vmem:[#allocation7] sm:$0xff]
        %v846 = vsel %vm329, %v844, 0
        %848 = vmatprep.subr.mxu0 0.0
        %849 = vmatpush1.msra.mxu0 0.0
        %850 = vmatprep.subr.mxu0 0.0
        %851 = vmatpush1.msra.mxu0 0.0
        %852 = vmatprep.subr.mxu0 0.0
        %853 = vmatpush1.msra.mxu0 0.0
        %854 = vmatprep.subr.mxu0 0.0
        %855 = vmatpush1.msra.mxu0 0.0
        %856 = vmatprep.subr.mxu0 0.0
        %857 = vmatpush1.msra.mxu0 0.0
        %858 = vmatprep.subr.mxu0 0.0
        %859 = vmatpush1.msra.mxu0 0.0
        %860 = vmatprep.subr.mxu0 0.0
        %861 = vmatpush1.msra.mxu0 0.0
        %862 = vmatprep.subr.mxu0 0.0
        %863 = vmatpush1.msra.mxu0 0.0
        %864 = vmatprep.subr.mxu0 0.0
        %865 = vmatpush1.msra.mxu0 0.0
        %866 = vmatprep.subr.mxu0 0.0
        %867 = vmatpush1.msra.mxu0 0.0
        %868 = vmatprep.subr.mxu0 0.0
        %869 = vmatpush1.msra.mxu0 0.0
        %870 = vmatprep.subr.mxu0 0.0
        %871 = vmatpush1.msra.mxu0 0.0
        %872 = vmatprep.subr.mxu0 0.0
        %873 = vmatpush1.msra.mxu0 0.0
        %874 = vmatprep.subr.mxu0 0.0
        %875 = vmatpush1.msra.mxu0 0.0
        %876 = vmatprep.subr.mxu0 0.0
        %877 = vmatpush1.msra.mxu0 0.0
        %878 = vmatprep.subr.mxu0 0.0
        %879 = vmatpush1.msra.mxu0 %v843
        %880 = vmatprep.subr.mxu0 0.0
        %881 = vmatpush2.msra.mxu0 0.0
        %882 = vmatprep.subr.mxu0 0.0
        %883 = vmatpush2.msra.mxu0 0.0
        %884 = vmatprep.subr.mxu0 0.0
        %885 = vmatpush2.msra.mxu0 0.0
        %886 = vmatprep.subr.mxu0 0.0
        %887 = vmatpush2.msra.mxu0 0.0
        %888 = vmatprep.subr.mxu0 0.0
        %889 = vmatpush2.msra.mxu0 0.0
        %890 = vmatprep.subr.mxu0 0.0
        %891 = vmatpush2.msra.mxu0 0.0
        %892 = vmatprep.subr.mxu0 0.0
        %893 = vmatpush2.msra.mxu0 0.0
        %894 = vmatprep.subr.mxu0 0.0
        %895 = vmatpush2.msra.mxu0 0.0
        %896 = vmatprep.subr.mxu0 0.0
        %897 = vmatpush2.msra.mxu0 0.0
        %898 = vmatprep.subr.mxu0 0.0
        %899 = vmatpush2.msra.mxu0 0.0
        %900 = vmatprep.subr.mxu0 0.0
        %901 = vmatpush2.msra.mxu0 0.0
        %902 = vmatprep.subr.mxu0 0.0
        %903 = vmatpush2.msra.mxu0 0.0
        %904 = vmatprep.subr.mxu0 0.0
        %905 = vmatpush2.msra.mxu0 0.0
        %906 = vmatprep.subr.mxu0 0.0
        %907 = vmatpush2.msra.mxu0 0.0
        %908 = vmatprep.subr.mxu0 0.0
        %909 = vmatpush2.msra.mxu0 0.0
        %910 = vmatprep.subr.mxu0 0.0
        %911 = vmatpush2.msra.mxu0 0.0
        %912 = vmatprep.mubr.f32.mxu0 0.0
        %913 = vmatmul.mubr.f32.gmra.mxu0 %v846
        %v914 = vpop.f32.mrf.mxu0
        %v915 = vadd.f32 0.0, %v914
        %v916 = vpop.f32.mrf.mxu0
        %917 = vdwg.mxu0
        %v918 = vlaneseq
        %v919 = vand.u32 %v918, 127
        %v920 = vlaneseq
        %v921 = vshrl.u32 %v920, 7
        %v922 = vmul.u32 %v921, 32
        %vm923 = vcmp.ge.s32.totalorder %v919, %v922
        %v924 = vadd.s32 %v921, 1
        %v925 = vmul.u32 %v924, 32
        %vm926 = vcmp.lt.s32.totalorder %v919, %v925
        %vm927 = vmand %vm923, %vm926
        %v928 = vsel %vm927, 1, 0
        %v929 = vcvt.s32.f32 %v928
        %v931 = vsel %vm832, %v915, 0
        %v934 = vsel %vm277, %v929, 0
        %936 = vmatprep.subr.mxu0 0.0
        %937 = vmatpush1.msra.mxu0 0.0
        %938 = vmatprep.subr.mxu0 0.0
        %939 = vmatpush1.msra.mxu0 0.0
        %940 = vmatprep.subr.mxu0 0.0
        %941 = vmatpush1.msra.mxu0 0.0
        %942 = vmatprep.subr.mxu0 0.0
        %943 = vmatpush1.msra.mxu0 0.0
        %944 = vmatprep.subr.mxu0 0.0
        %945 = vmatpush1.msra.mxu0 0.0
        %946 = vmatprep.subr.mxu0 0.0
        %947 = vmatpush1.msra.mxu0 0.0
        %948 = vmatprep.subr.mxu0 0.0
        %949 = vmatpush1.msra.mxu0 0.0
        %950 = vmatprep.subr.mxu0 0.0
        %951 = vmatpush1.msra.mxu0 0.0
        %952 = vmatprep.subr.mxu0 0.0
        %953 = vmatpush1.msra.mxu0 0.0
        %954 = vmatprep.subr.mxu0 0.0
        %955 = vmatpush1.msra.mxu0 0.0
        %956 = vmatprep.subr.mxu0 0.0
        %957 = vmatpush1.msra.mxu0 0.0
        %958 = vmatprep.subr.mxu0 0.0
        %959 = vmatpush1.msra.mxu0 0.0
        %960 = vmatprep.subr.mxu0 0.0
        %961 = vmatpush1.msra.mxu0 0.0
        %962 = vmatprep.subr.mxu0 0.0
        %963 = vmatpush1.msra.mxu0 0.0
        %964 = vmatprep.subr.mxu0 0.0
        %965 = vmatpush1.msra.mxu0 0.0
        %966 = vmatprep.subr.mxu0 0.0
        %967 = vmatpush1.msra.mxu0 %v934
        %968 = vmatprep.subr.mxu0 0.0
        %969 = vmatpush2.msra.mxu0 0.0
        %970 = vmatprep.subr.mxu0 0.0
        %971 = vmatpush2.msra.mxu0 0.0
        %972 = vmatprep.subr.mxu0 0.0
        %973 = vmatpush2.msra.mxu0 0.0
        %974 = vmatprep.subr.mxu0 0.0
        %975 = vmatpush2.msra.mxu0 0.0
        %976 = vmatprep.subr.mxu0 0.0
        %977 = vmatpush2.msra.mxu0 0.0
        %978 = vmatprep.subr.mxu0 0.0
        %979 = vmatpush2.msra.mxu0 0.0
        %980 = vmatprep.subr.mxu0 0.0
        %981 = vmatpush2.msra.mxu0 0.0
        %982 = vmatprep.subr.mxu0 0.0
        %983 = vmatpush2.msra.mxu0 0.0
        %984 = vmatprep.subr.mxu0 0.0
        %985 = vmatpush2.msra.mxu0 0.0
        %986 = vmatprep.subr.mxu0 0.0
        %987 = vmatpush2.msra.mxu0 0.0
        %988 = vmatprep.subr.mxu0 0.0
        %989 = vmatpush2.msra.mxu0 0.0
        %990 = vmatprep.subr.mxu0 0.0
        %991 = vmatpush2.msra.mxu0 0.0
        %992 = vmatprep.subr.mxu0 0.0
        %993 = vmatpush2.msra.mxu0 0.0
        %994 = vmatprep.subr.mxu0 0.0
        %995 = vmatpush2.msra.mxu0 0.0
        %996 = vmatprep.subr.mxu0 0.0
        %997 = vmatpush2.msra.mxu0 0.0
        %998 = vmatprep.subr.mxu0 0.0
        %999 = vmatpush2.msra.mxu0 0.0
        %1000 = vmatprep.mubr.f32.mxu0 0.0
        %1001 = vmatmul.mubr.f32.gmra.mxu0 %v931
        %v1002 = vpop.f32.mrf.mxu0
        %v1003 = vadd.f32 0.0, %v1002
        %v1004 = vpop.f32.mrf.mxu0
        %1005 = vdwg.mxu0
        %v1006 = vld [vmem:[#allocation8] sm:$0xff]
        %v1008 = vsel %vm329, %v1006, 0
        %1010 = vmatprep.subr.mxu0 0.0
        %1011 = vmatpush1.msra.mxu0 0.0
        %1012 = vmatprep.subr.mxu0 0.0
        %1013 = vmatpush1.msra.mxu0 0.0
        %1014 = vmatprep.subr.mxu0 0.0
        %1015 = vmatpush1.msra.mxu0 0.0
        %1016 = vmatprep.subr.mxu0 0.0
        %1017 = vmatpush1.msra.mxu0 0.0
        %1018 = vmatprep.subr.mxu0 0.0
        %1019 = vmatpush1.msra.mxu0 0.0
        %1020 = vmatprep.subr.mxu0 0.0
        %1021 = vmatpush1.msra.mxu0 0.0
        %1022 = vmatprep.subr.mxu0 0.0
        %1023 = vmatpush1.msra.mxu0 0.0
        %1024 = vmatprep.subr.mxu0 0.0
        %1025 = vmatpush1.msra.mxu0 0.0
        %1026 = vmatprep.subr.mxu0 0.0
        %1027 = vmatpush1.msra.mxu0 0.0
        %1028 = vmatprep.subr.mxu0 0.0
        %1029 = vmatpush1.msra.mxu0 0.0
        %1030 = vmatprep.subr.mxu0 0.0
        %1031 = vmatpush1.msra.mxu0 0.0
        %1032 = vmatprep.subr.mxu0 0.0
        %1033 = vmatpush1.msra.mxu0 0.0
        %1034 = vmatprep.subr.mxu0 0.0
        %1035 = vmatpush1.msra.mxu0 0.0
        %1036 = vmatprep.subr.mxu0 0.0
        %1037 = vmatpush1.msra.mxu0 0.0
        %1038 = vmatprep.subr.mxu0 0.0
        %1039 = vmatpush1.msra.mxu0 0.0
        %1040 = vmatprep.subr.mxu0 0.0
        %1041 = vmatpush1.msra.mxu0 %v1003
        %1042 = vmatprep.subr.mxu0 0.0
        %1043 = vmatpush2.msra.mxu0 0.0
        %1044 = vmatprep.subr.mxu0 0.0
        %1045 = vmatpush2.msra.mxu0 0.0
        %1046 = vmatprep.subr.mxu0 0.0
        %1047 = vmatpush2.msra.mxu0 0.0
        %1048 = vmatprep.subr.mxu0 0.0
        %1049 = vmatpush2.msra.mxu0 0.0
        %1050 = vmatprep.subr.mxu0 0.0
        %1051 = vmatpush2.msra.mxu0 0.0
        %1052 = vmatprep.subr.mxu0 0.0
        %1053 = vmatpush2.msra.mxu0 0.0
        %1054 = vmatprep.subr.mxu0 0.0
        %1055 = vmatpush2.msra.mxu0 0.0
        %1056 = vmatprep.subr.mxu0 0.0
        %1057 = vmatpush2.msra.mxu0 0.0
        %1058 = vmatprep.subr.mxu0 0.0
        %1059 = vmatpush2.msra.mxu0 0.0
        %1060 = vmatprep.subr.mxu0 0.0
        %1061 = vmatpush2.msra.mxu0 0.0
        %1062 = vmatprep.subr.mxu0 0.0
        %1063 = vmatpush2.msra.mxu0 0.0
        %1064 = vmatprep.subr.mxu0 0.0
        %1065 = vmatpush2.msra.mxu0 0.0
        %1066 = vmatprep.subr.mxu0 0.0
        %1067 = vmatpush2.msra.mxu0 0.0
        %1068 = vmatprep.subr.mxu0 0.0
        %1069 = vmatpush2.msra.mxu0 0.0
        %1070 = vmatprep.subr.mxu0 0.0
        %1071 = vmatpush2.msra.mxu0 0.0
        %1072 = vmatprep.subr.mxu0 0.0
        %1073 = vmatpush2.msra.mxu0 0.0
        %1074 = vmatprep.mubr.f32.mxu0 0.0
        %1075 = vmatmul.mubr.f32.gmra.mxu0 %v1008
        %v1076 = vpop.f32.mrf.mxu0
        %v1077 = vadd.f32 0.0, %v1076
        %v1078 = vpop.f32.mrf.mxu0
        %1079 = vdwg.mxu0
        %1081 = vrot.lane.b32.xlu0 %v843, 16
        %v1082 = vpop.permute.xlu0 %1081
        %v1084 = vsel %vm260, %v650, %v1082
        %v1085 = vld [vmem:[#allocation5 + $0x1a8] sm:$0xff]
        %v1086 = vld [vmem:[#allocation5 + $0x1b0] sm:$0xff]
        %v1087 = vld [vmem:[#allocation5 + $0x1b8] sm:$0xf]
        %v1088 = vpack.c.bf16 %v1084, %v1084
        %v1089 = vpack.c.bf16 %v1086, %v1085
        %v1090 = vpack.c.bf16 %v1087, %v1087
        %vm1091 = vcmask 162816
        %v1093 = vsel %vm1091, %v1088, 0
        %vm1095 = vcmask 1041408
        %v1097 = vsel %vm1095, %v1090, 0
        %1099 = vmatprep.subr.bf16.mxu0 0
        %1100 = vmatpush1.bf16.msra.mxu0 0
        %1101 = vmatprep.subr.bf16.mxu0 0
        %1102 = vmatpush1.bf16.msra.mxu0 0
        %1103 = vmatprep.subr.bf16.mxu0 0
        %1104 = vmatpush1.bf16.msra.mxu0 0
        %1105 = vmatprep.subr.bf16.mxu0 0
        %1106 = vmatpush1.bf16.msra.mxu0 0
        %1107 = vmatprep.subr.bf16.mxu0 0
        %1108 = vmatpush1.bf16.msra.mxu0 0
        %1109 = vmatprep.subr.bf16.mxu0 0
        %1110 = vmatpush1.bf16.msra.mxu0 0
        %1111 = vmatprep.subr.bf16.mxu0 0
        %1112 = vmatpush1.bf16.msra.mxu0 %v1097
        %1113 = vmatprep.subr.bf16.mxu0 0
        %1114 = vmatpush1.bf16.msra.mxu0 %v1089
        %1115 = vmatprep.subr.bf16.mxu0 0
        %1116 = vmatpush2.bf16.msra.mxu0 0
        %1117 = vmatprep.subr.bf16.mxu0 0
        %1118 = vmatpush2.bf16.msra.mxu0 0
        %1119 = vmatprep.subr.bf16.mxu0 0
        %1120 = vmatpush2.bf16.msra.mxu0 0
        %1121 = vmatprep.subr.bf16.mxu0 0
        %1122 = vmatpush2.bf16.msra.mxu0 0
        %1123 = vmatprep.subr.bf16.mxu0 0
        %1124 = vmatpush2.bf16.msra.mxu0 0
        %1125 = vmatprep.subr.bf16.mxu0 0
        %1126 = vmatpush2.bf16.msra.mxu0 0
        %1127 = vmatprep.subr.bf16.mxu0 0
        %1128 = vmatpush2.bf16.msra.mxu0 0
        %1129 = vmatprep.subr.bf16.mxu0 0
        %1130 = vmatpush2.bf16.msra.mxu0 0
        %1131 = vmatprep.mubr.bf16.mxu0 0
        %1132 = vmatmul.mubr.bf16.gmra.mxu0 %v1093
        %v1133 = vpop.f32.mrf.mxu0
        %v1134 = vadd.f32 0.0, %v1133
        %v1135 = vpop.f32.mrf.mxu0
        %v1136 = vpop.f32.mrf.mxu0
        %v1137 = vpop.f32.mrf.mxu0
        %1138 = vdwg.mxu0
        %v1139 = vmul.f32 %v1134, %v1077
        %1140 = vrot.lane.b32.xlu0 %v1139, 64
        %v1141 = vpop.permute.xlu0 %1140
        %v1142 = vadd.f32 %v1139, %v1141
        %1143 = vrot.lane.b32.xlu0 %v1142, 32
        %v1144 = vpop.permute.xlu0 %1143
        %v1145 = vadd.f32 %v1142, %v1144
        %vm1146 = vcmp.ge.f32.partialorder %v1145, 0.0
        %v1147 = vmul.f32 %v1145, 0.01
        %v1148 = vsel %vm1146, %v1145, %v1147
        %1150 = vrot.lane.b32.xlu0 %v1148, 20
        %v1151 = vpop.permute.xlu0 %1150
        %v1153 = vsel %vm1091, %v1084, %v1151
        %v1154 = vld [vmem:[#allocation5 + $0x1c0] sm:$0xff]
        %v1155 = vld [vmem:[#allocation5 + $0x1c8] sm:$0xff]
        %v1156 = vld [vmem:[#allocation5 + $0x1d0] sm:$0xff]
        %v1157 = vld [vmem:[#allocation5 + $0x1d8] sm:$0xff]
        %v1158 = vld [vmem:[#allocation5 + $0x1e0] sm:$0xff]
        %v1159 = vld [vmem:[#allocation5 + $0x1e8] sm:$0xff]
        %v1160 = vld [vmem:[#allocation5 + $0x1f0] sm:$0xf]
        %v1161 = vpack.c.bf16 %v1153, %v1153
        %v1162 = vpack.c.bf16 %v1155, %v1154
        %v1163 = vpack.c.bf16 %v1157, %v1156
        %v1164 = vpack.c.bf16 %v1159, %v1158
        %v1165 = vpack.c.bf16 %v1160, %v1160
        %vm1166 = vcmask 424960
        %v1168 = vsel %vm1166, %v1161, 0
        %v1171 = vsel %vm1095, %v1165, 0
        %1173 = vmatprep.subr.bf16.mxu0 0
        %1174 = vmatpush1.bf16.msra.mxu0 0
        %1175 = vmatprep.subr.bf16.mxu0 0
        %1176 = vmatpush1.bf16.msra.mxu0 0
        %1177 = vmatprep.subr.bf16.mxu0 0
        %1178 = vmatpush1.bf16.msra.mxu0 0
        %1179 = vmatprep.subr.bf16.mxu0 0
        %1180 = vmatpush1.bf16.msra.mxu0 0
        %1181 = vmatprep.subr.bf16.mxu0 0
        %1182 = vmatpush1.bf16.msra.mxu0 %v1171
        %1183 = vmatprep.subr.bf16.mxu0 0
        %1184 = vmatpush1.bf16.msra.mxu0 %v1164
        %1185 = vmatprep.subr.bf16.mxu0 0
        %1186 = vmatpush1.bf16.msra.mxu0 %v1163
        %1187 = vmatprep.subr.bf16.mxu0 0
        %1188 = vmatpush1.bf16.msra.mxu0 %v1162
        %1189 = vmatprep.subr.bf16.mxu0 0
        %1190 = vmatpush2.bf16.msra.mxu0 0
        %1191 = vmatprep.subr.bf16.mxu0 0
        %1192 = vmatpush2.bf16.msra.mxu0 0
        %1193 = vmatprep.subr.bf16.mxu0 0
        %1194 = vmatpush2.bf16.msra.mxu0 0
        %1195 = vmatprep.subr.bf16.mxu0 0
        %1196 = vmatpush2.bf16.msra.mxu0 0
        %1197 = vmatprep.subr.bf16.mxu0 0
        %1198 = vmatpush2.bf16.msra.mxu0 0
        %1199 = vmatprep.subr.bf16.mxu0 0
        %1200 = vmatpush2.bf16.msra.mxu0 0
        %1201 = vmatprep.subr.bf16.mxu0 0
        %1202 = vmatpush2.bf16.msra.mxu0 0
        %1203 = vmatprep.subr.bf16.mxu0 0
        %1204 = vmatpush2.bf16.msra.mxu0 0
        %1205 = vmatprep.mubr.bf16.mxu0 0
        %1206 = vmatmul.mubr.bf16.gmra.mxu0 %v1168
        %v1207 = vpop.f32.mrf.mxu0
        %v1208 = vadd.f32 0.0, %v1207
        %v1209 = vpop.f32.mrf.mxu0
        %v1210 = vpop.f32.mrf.mxu0
        %v1211 = vpop.f32.mrf.mxu0
        %1212 = vdwg.mxu0
        %v1213 = vmul.f32 %v1208, %v1077
        %1214 = vrot.lane.b32.xlu0 %v1213, 64
        %v1215 = vpop.permute.xlu0 %1214
        %v1216 = vadd.f32 %v1213, %v1215
        %1217 = vrot.lane.b32.xlu0 %v1216, 32
        %v1218 = vpop.permute.xlu0 %1217
        %v1219 = vadd.f32 %v1216, %v1218
        %vm1220 = vcmp.ge.f32.partialorder %v1219, 0.0
        %v1221 = vmul.f32 %v1219, 0.01
        %v1222 = vsel %vm1220, %v1219, %v1221
        %1224 = vrot.lane.b32.xlu0 %v1222, 20
        %v1225 = vpop.permute.xlu0 %1224
        %v1227 = vsel %vm1091, %v1084, %v1225
        %v1228 = vld [vmem:[#allocation5 + $0x1f8] sm:$0xff]
        %v1229 = vld [vmem:[#allocation5 + $0x200] sm:$0xff]
        %v1230 = vld [vmem:[#allocation5 + $0x208] sm:$0xff]
        %v1231 = vld [vmem:[#allocation5 + $0x210] sm:$0xff]
        %v1232 = vld [vmem:[#allocation5 + $0x218] sm:$0xff]
        %v1233 = vld [vmem:[#allocation5 + $0x220] sm:$0xff]
        %v1234 = vld [vmem:[#allocation5 + $0x228] sm:$0xf]
        %v1235 = vpack.c.bf16 %v1227, %v1227
        %v1236 = vpack.c.bf16 %v1229, %v1228
        %v1237 = vpack.c.bf16 %v1231, %v1230
        %v1238 = vpack.c.bf16 %v1233, %v1232
        %v1239 = vpack.c.bf16 %v1234, %v1234
        %v1241 = vsel %vm1166, %v1235, 0
        %v1244 = vsel %vm1095, %v1239, 0
        %1246 = vmatprep.subr.bf16.mxu0 0
        %1247 = vmatpush1.bf16.msra.mxu0 0
        %1248 = vmatprep.subr.bf16.mxu0 0
        %1249 = vmatpush1.bf16.msra.mxu0 0
        %1250 = vmatprep.subr.bf16.mxu0 0
        %1251 = vmatpush1.bf16.msra.mxu0 0
        %1252 = vmatprep.subr.bf16.mxu0 0
        %1253 = vmatpush1.bf16.msra.mxu0 0
        %1254 = vmatprep.subr.bf16.mxu0 0
        %1255 = vmatpush1.bf16.msra.mxu0 %v1244
        %1256 = vmatprep.subr.bf16.mxu0 0
        %1257 = vmatpush1.bf16.msra.mxu0 %v1238
        %1258 = vmatprep.subr.bf16.mxu0 0
        %1259 = vmatpush1.bf16.msra.mxu0 %v1237
        %1260 = vmatprep.subr.bf16.mxu0 0
        %1261 = vmatpush1.bf16.msra.mxu0 %v1236
        %1262 = vmatprep.subr.bf16.mxu0 0
        %1263 = vmatpush2.bf16.msra.mxu0 0
        %1264 = vmatprep.subr.bf16.mxu0 0
        %1265 = vmatpush2.bf16.msra.mxu0 0
        %1266 = vmatprep.subr.bf16.mxu0 0
        %1267 = vmatpush2.bf16.msra.mxu0 0
        %1268 = vmatprep.subr.bf16.mxu0 0
        %1269 = vmatpush2.bf16.msra.mxu0 0
        %1270 = vmatprep.subr.bf16.mxu0 0
        %1271 = vmatpush2.bf16.msra.mxu0 0
        %1272 = vmatprep.subr.bf16.mxu0 0
        %1273 = vmatpush2.bf16.msra.mxu0 0
        %1274 = vmatprep.subr.bf16.mxu0 0
        %1275 = vmatpush2.bf16.msra.mxu0 0
        %1276 = vmatprep.subr.bf16.mxu0 0
        %1277 = vmatpush2.bf16.msra.mxu0 0
        %1278 = vmatprep.mubr.bf16.mxu0 0
        %1279 = vmatmul.mubr.bf16.gmra.mxu0 %v1241
        %v1280 = vpop.f32.mrf.mxu0
        %v1281 = vadd.f32 0.0, %v1280
        %v1282 = vpop.f32.mrf.mxu0
        %v1283 = vpop.f32.mrf.mxu0
        %v1284 = vpop.f32.mrf.mxu0
        %1285 = vdwg.mxu0
        %v1286 = vmul.f32 %v1281, %v1077
        %1287 = vrot.lane.b32.xlu0 %v1286, 64
        %v1288 = vpop.permute.xlu0 %1287
        %v1289 = vadd.f32 %v1286, %v1288
        %1290 = vrot.lane.b32.xlu0 %v1289, 32
        %v1291 = vpop.permute.xlu0 %1290
        %v1292 = vadd.f32 %v1289, %v1291
        %vm1293 = vcmp.ge.f32.partialorder %v1292, 0.0
        %v1294 = vmul.f32 %v1292, 0.01
        %v1295 = vsel %vm1293, %v1292, %v1294
        %1297 = vrot.lane.b32.xlu0 %v1295, 20
        %v1298 = vpop.permute.xlu0 %1297
        %v1300 = vsel %vm1091, %v1084, %v1298
        %v1301 = vld [vmem:[#allocation5 + $0x230] sm:$0xff]
        %v1302 = vld [vmem:[#allocation5 + $0x238] sm:$0xff]
        %v1303 = vld [vmem:[#allocation5 + $0x240] sm:$0xff]
        %v1304 = vld [vmem:[#allocation5 + $0x248] sm:$0xff]
        %v1305 = vld [vmem:[#allocation5 + $0x250] sm:$0xff]
        %v1306 = vld [vmem:[#allocation5 + $0x258] sm:$0xff]
        %v1307 = vld [vmem:[#allocation5 + $0x260] sm:$0xf]
        %v1308 = vpack.c.bf16 %v1300, %v1300
        %v1309 = vpack.c.bf16 %v1302, %v1301
        %v1310 = vpack.c.bf16 %v1304, %v1303
        %v1311 = vpack.c.bf16 %v1306, %v1305
        %v1312 = vpack.c.bf16 %v1307, %v1307
        %v1314 = vsel %vm1166, %v1308, 0
        %v1317 = vsel %vm1095, %v1312, 0
        %1319 = vmatprep.subr.bf16.mxu0 0
        %1320 = vmatpush1.bf16.msra.mxu0 0
        %1321 = vmatprep.subr.bf16.mxu0 0
        %1322 = vmatpush1.bf16.msra.mxu0 0
        %1323 = vmatprep.subr.bf16.mxu0 0
        %1324 = vmatpush1.bf16.msra.mxu0 0
        %1325 = vmatprep.subr.bf16.mxu0 0
        %1326 = vmatpush1.bf16.msra.mxu0 0
        %1327 = vmatprep.subr.bf16.mxu0 0
        %1328 = vmatpush1.bf16.msra.mxu0 %v1317
        %1329 = vmatprep.subr.bf16.mxu0 0
        %1330 = vmatpush1.bf16.msra.mxu0 %v1311
        %1331 = vmatprep.subr.bf16.mxu0 0
        %1332 = vmatpush1.bf16.msra.mxu0 %v1310
        %1333 = vmatprep.subr.bf16.mxu0 0
        %1334 = vmatpush1.bf16.msra.mxu0 %v1309
        %1335 = vmatprep.subr.bf16.mxu0 0
        %1336 = vmatpush2.bf16.msra.mxu0 0
        %1337 = vmatprep.subr.bf16.mxu0 0
        %1338 = vmatpush2.bf16.msra.mxu0 0
        %1339 = vmatprep.subr.bf16.mxu0 0
        %1340 = vmatpush2.bf16.msra.mxu0 0
        %1341 = vmatprep.subr.bf16.mxu0 0
        %1342 = vmatpush2.bf16.msra.mxu0 0
        %1343 = vmatprep.subr.bf16.mxu0 0
        %1344 = vmatpush2.bf16.msra.mxu0 0
        %1345 = vmatprep.subr.bf16.mxu0 0
        %1346 = vmatpush2.bf16.msra.mxu0 0
        %1347 = vmatprep.subr.bf16.mxu0 0
        %1348 = vmatpush2.bf16.msra.mxu0 0
        %1349 = vmatprep.subr.bf16.mxu0 0
        %1350 = vmatpush2.bf16.msra.mxu0 0
        %1351 = vmatprep.mubr.bf16.mxu0 0
        %1352 = vmatmul.mubr.bf16.gmra.mxu0 %v1314
        %v1353 = vpop.f32.mrf.mxu0
        %v1354 = vadd.f32 0.0, %v1353
        %v1355 = vpop.f32.mrf.mxu0
        %v1356 = vpop.f32.mrf.mxu0
        %v1357 = vpop.f32.mrf.mxu0
        %1358 = vdwg.mxu0
        %v1359 = vmul.f32 %v1354, %v1077
        %1360 = vrot.lane.b32.xlu0 %v1359, 64
        %v1361 = vpop.permute.xlu0 %1360
        %v1362 = vadd.f32 %v1359, %v1361
        %1363 = vrot.lane.b32.xlu0 %v1362, 32
        %v1364 = vpop.permute.xlu0 %1363
        %v1365 = vadd.f32 %v1362, %v1364
        %vm1366 = vcmp.ge.f32.partialorder %v1365, 0.0
        %v1367 = vmul.f32 %v1365, 0.01
        %v1368 = vsel %vm1366, %v1365, %v1367
        %1370 = vrot.lane.b32.xlu0 %v1368, 20
        %v1371 = vpop.permute.xlu0 %1370
        %v1373 = vsel %vm1091, %v1084, %v1371
        %v1374 = vld [vmem:[#allocation5 + $0x268] sm:$0xff]
        %v1375 = vld [vmem:[#allocation5 + $0x270] sm:$0xff]
        %v1376 = vld [vmem:[#allocation5 + $0x278] sm:$0xff]
        %v1377 = vld [vmem:[#allocation5 + $0x280] sm:$0xff]
        %v1378 = vld [vmem:[#allocation5 + $0x288] sm:$0xff]
        %v1379 = vld [vmem:[#allocation5 + $0x290] sm:$0xff]
        %v1380 = vld [vmem:[#allocation5 + $0x298] sm:$0xf]
        %v1381 = vpack.c.bf16 %v1373, %v1373
        %v1382 = vpack.c.bf16 %v1375, %v1374
        %v1383 = vpack.c.bf16 %v1377, %v1376
        %v1384 = vpack.c.bf16 %v1379, %v1378
        %v1385 = vpack.c.bf16 %v1380, %v1380
        %v1387 = vsel %vm1166, %v1381, 0
        %v1390 = vsel %vm1095, %v1385, 0
        %1392 = vmatprep.subr.bf16.mxu0 0
        %1393 = vmatpush1.bf16.msra.mxu0 0
        %1394 = vmatprep.subr.bf16.mxu0 0
        %1395 = vmatpush1.bf16.msra.mxu0 0
        %1396 = vmatprep.subr.bf16.mxu0 0
        %1397 = vmatpush1.bf16.msra.mxu0 0
        %1398 = vmatprep.subr.bf16.mxu0 0
        %1399 = vmatpush1.bf16.msra.mxu0 0
        %1400 = vmatprep.subr.bf16.mxu0 0
        %1401 = vmatpush1.bf16.msra.mxu0 %v1390
        %1402 = vmatprep.subr.bf16.mxu0 0
        %1403 = vmatpush1.bf16.msra.mxu0 %v1384
        %1404 = vmatprep.subr.bf16.mxu0 0
        %1405 = vmatpush1.bf16.msra.mxu0 %v1383
        %1406 = vmatprep.subr.bf16.mxu0 0
        %1407 = vmatpush1.bf16.msra.mxu0 %v1382
        %1408 = vmatprep.subr.bf16.mxu0 0
        %1409 = vmatpush2.bf16.msra.mxu0 0
        %1410 = vmatprep.subr.bf16.mxu0 0
        %1411 = vmatpush2.bf16.msra.mxu0 0
        %1412 = vmatprep.subr.bf16.mxu0 0
        %1413 = vmatpush2.bf16.msra.mxu0 0
        %1414 = vmatprep.subr.bf16.mxu0 0
        %1415 = vmatpush2.bf16.msra.mxu0 0
        %1416 = vmatprep.subr.bf16.mxu0 0
        %1417 = vmatpush2.bf16.msra.mxu0 0
        %1418 = vmatprep.subr.bf16.mxu0 0
        %1419 = vmatpush2.bf16.msra.mxu0 0
        %1420 = vmatprep.subr.bf16.mxu0 0
        %1421 = vmatpush2.bf16.msra.mxu0 0
        %1422 = vmatprep.subr.bf16.mxu0 0
        %1423 = vmatpush2.bf16.msra.mxu0 0
        %1424 = vmatprep.mubr.bf16.mxu0 0
        %1425 = vmatmul.mubr.bf16.gmra.mxu0 %v1387
        %v1426 = vpop.f32.mrf.mxu0
        %v1427 = vadd.f32 0.0, %v1426
        %v1428 = vpop.f32.mrf.mxu0
        %v1429 = vpop.f32.mrf.mxu0
        %v1430 = vpop.f32.mrf.mxu0
        %1431 = vdwg.mxu0
        %v1432 = vmul.f32 %v1427, %v1077
        %1433 = vrot.lane.b32.xlu0 %v1432, 64
        %v1434 = vpop.permute.xlu0 %1433
        %v1435 = vadd.f32 %v1432, %v1434
        %1436 = vrot.lane.b32.xlu0 %v1435, 32
        %v1437 = vpop.permute.xlu0 %1436
        %v1438 = vadd.f32 %v1435, %v1437
        %1440 = vrot.lane.b32.xlu0 %v1438, 8
        %v1441 = vpop.permute.xlu0 %1440
        %1444 = vrot.lane.b32.xlu0 %v576, 24
        %v1445 = vpop.permute.xlu0 %1444
        %1448 = vrot.lane.b32.xlu0 %v633, 32
        %v1449 = vpop.permute.xlu0 %1448
        %v1451 = vsel %vm329, %v646, %v1441
        %v1452 = vsel %vm273, %v1451, %v1445
        %v1453 = vsel %vm537, %v1452, %v1449
        %v1454 = vsel %vm345, %v1453, 0.0
        %1455 = vst [vmem:[%s252] sm:$0xff] %v1454
        %s1456 = sand.u32 %s120, 1
        %s1457 = scalar_lea.sflag [#allocation4], %s1456
        %s1458 = sand.u32 %s120, 1
        %s1459 = smul.addr %s1458, 8
        %s1460 = scalar_lea.vmem [#allocation10], %s1459
        // Predicated region
        $region53: #{tpu_custom_call.1} parent=35 // pred_check
          %p1461 = pneg %p130
        $region54: #{tpu_custom_call.1} parent=35 // pred_check_branch
          %1463 = sbr.rel (%p1461) target = $region56
        $region55: #{tpu_custom_call.1} parent=35 // pred_region
          %s1465 = ssub.s32 128, 128
          %1466 = vsyncadd %s1457, %s1465
          %s1467 = smul.addr %s23, 128
          %s1468 = scalar_lea.hbm %s4, %s1467
          %s1470 = sshll.u32 %s1460, 4
          %s1471 = int_to_ptr.vmem [resolvable:$true] %s1470
          %1473 = dma.vmem_to_hbm [thread:$0]  %s1471, 128, %s1468, %s1457
        $region56: #{tpu_custom_call.1} parent=35 // pred_fallthru
          _
      $region36: #{tpu_custom_call.1} parent=5 // pred_fallthru
        _
      %p1474 = scmp.le.s32.totalorder 2, %s18
      // Predicated region
      $region57: #{tpu_custom_call.1} parent=5 // pred_check
        %p1475 = pneg %p1474
      $region58: #{tpu_custom_call.1} parent=5 // pred_check_branch
        %1477 = sbr.rel (%p1475) target = $region60
      $region59: #{tpu_custom_call.1} parent=5 // pred_region
        %s1478 = ssub.s32 %s18, 2
        // Predicated region
        $region61: #{tpu_custom_call.1} parent=59 // pred_check
          %p1479 = pneg %p136
        $region62: #{tpu_custom_call.1} parent=59 // pred_check_branch
          %1481 = sbr.rel (%p1479) target = $region64
        $region63: #{tpu_custom_call.1} parent=59 // pred_region
          %s1482 = sand.u32 %s121, 1
          %s1483 = scalar_lea.sflag [#allocation4], %s1482
          %s1484 = sand.u32 %s121, 1
          %s1485 = smul.addr %s1484, 8
          %s1486 = scalar_lea.vmem [#allocation10], %s1485
          %1487 = dma.done %s1483, 128
        $region64: #{tpu_custom_call.1} parent=59 // pred_fallthru
          _
      $region60: #{tpu_custom_call.1} parent=5 // pred_fallthru
        _
    $region6: #{tpu_custom_call.1} parent=1 // loop_footer
      %s22 = sadd.s32 1, %s18
    $region7: #{tpu_custom_call.1} parent=1 // loop_footer_branch
      %17 = sbr.rel target = $region3
    $region8: #{tpu_custom_call.1} parent=1 // loop_exit
      _
    %1488 = vsyncpa [#allocation3], 1
    %s1489 = scalar_lea.sflag [#allocation3], 1
    %1490 = vsyncpa %s1489, 1
    %1491 = vsyncpa [#allocation6], 1
    %1492 = vsyncpa [#allocation9], 1
    %1493 = vsyncpa [#allocation4], 1
    %s1494 = scalar_lea.sflag [#allocation4], 1
    %1495 = vsyncpa %s1494, 1

</llo_original>
